<compile_context>
chip_gen: v7x
topology: tpu7x:2x2x1
jax: 0.10.0
libtpu: 0.0.40
codegen_flags: <defaults>
</compile_context>

<pallas_src>
import jax
import jax.numpy as jnp
from jax import lax
from jax.experimental import pallas as pl
from jax.experimental.pallas import tpu as pltpu


def _global_attn_kernel(len_ref, q_ref, k_ref, w_in_ref, w_c_ref, w_q_ref,
                        attnh_ref, av_ref, align_ref):
    Bb, Tq, Dq = q_ref.shape          # padded dims: Tq % 8 == 0, Dq % 128 == 0
    _, Ts, Dk = k_ref.shape           # Ts % 128 == 0, Dk % 128 == 0

    q3 = q_ref[...]                   # (Bb, Tq, Dq)
    k3 = k_ref[...]                   # (Bb, Ts, Dk)
    w_in = w_in_ref[...]              # (Dk, Dq)
    w_c = w_c_ref[...]                # (Dq, Dk)   lane-aligned, pre-split
    w_q = w_q_ref[...]                # (Dq, Dq)

    M = Bb * Tq
    q2 = q3.reshape(M, Dq)            # layout no-op (Tq mult of 8, Dq mult of 128)

    # linear_in: q @ W_in^T  (contract last dims; no .T copies)
    q_t = lax.dot_general(q2, w_in, (((1,), (1,)), ((), ())),
                          preferred_element_type=jnp.float32)          # (M, Dk)
    q_t3 = q_t.reshape(Bb, Tq, Dk)

    # score(): batched q_t @ key^T over the batch block
    align = lax.dot_general(q_t3, k3, (((2,), (2,)), ((0,), (0,))),
                            preferred_element_type=jnp.float32)        # (Bb, Tq, Ts)

    # sequence mask (torch masked_fill_ with -inf), single vectorized where;
    # also masks out the zero-padded key positions Ts_real..Ts.
    col = lax.broadcasted_iota(jnp.int32, (Bb, Tq, Ts), 2)
    align = jnp.where(col < len_ref[...], align, jnp.float32(-jnp.inf))

    # softmax over src_len (exact, f32); reciprocal on the small tensor only
    m = jnp.max(align, axis=-1, keepdims=True)
    e = jnp.exp(align - m)
    denom = jnp.sum(e, axis=-1, keepdims=True)
    inv = 1.0 / denom                                                  # (Bb, Tq, 1)
    av = e * inv                                                       # (Bb, Tq, Ts)

    # context c = align_vectors @ memory_bank (batched over the block)
    c = lax.dot_general(av, k3, (((2,), (1,)), ((0,), (0,))),
                        preferred_element_type=jnp.float32)            # (Bb, Tq, Dk)

    # linear_out(cat([c, q])) == c @ W_c^T + q @ W_q^T   (weights pre-split)
    c2 = c.reshape(M, Dk)
    h = (lax.dot_general(c2, w_c, (((1,), (1,)), ((), ())),
                         preferred_element_type=jnp.float32) +
         lax.dot_general(q2, w_q, (((1,), (1,)), ((), ())),
                         preferred_element_type=jnp.float32))          # (M, Dq)

    attnh_ref[...] = jnp.tanh(h).reshape(Bb, Tq, Dq).astype(attnh_ref.dtype)
    av_ref[...] = av.astype(av_ref.dtype)
    align_ref[...] = align.astype(align_ref.dtype)


def _round_up(x, m):
    return ((x + m - 1) // m) * m


def _pick_block_b(B, tq, ts, dq, dk, data_budget_bytes=32 << 20):
    """Largest divisor of B that (a) keeps grid >= 2 when B >= 2 so both v7x
    TensorCores get work, and (b) keeps double-buffered per-step data tiles
    inside the VMEM budget.  (Also maximizes M = block_b*Tq for MXU row-fill
    subject to (a).)"""
    def data_bytes(bb):
        per_step = bb * (2 * tq * dq + ts * dk + 2 * tq * ts) * 4
        return 2 * per_step                       # double-buffered data tiles
    cap = B if B < 2 else B // 2                  # grid >= 2 for megacore
    for bb in range(cap, 0, -1):
        if B % bb == 0 and data_bytes(bb) <= data_budget_bytes:
            return bb
    return 1


def global_attention(query, memory_bank, memory_lengths=None, w_in=None, w_out=None,
                     block_b=None):
    """Pallas implementation of GlobalAttention.forward(use_softmax=True)."""
    B, Tq, Dq = query.shape
    Bk, Ts, Dk = memory_bank.shape
    assert Bk == B
    assert w_in.shape == (Dk, Dq)
    assert w_out.shape == (Dq, Dk + Dq)

    if memory_lengths is None:
        memory_lengths = jnp.full((B,), Ts, dtype=jnp.int32)

    # ---- lane/sublane-dense padding (sliced off after the call) ----
    Tq_p = _round_up(Tq, 8)
    Ts_p = _round_up(Ts, 128)
    Dq_p = _round_up(Dq, 128)
    Dk_p = _round_up(Dk, 128)

    q_p = jnp.pad(query, ((0, 0), (0, Tq_p - Tq), (0, Dq_p - Dq)))
    k_p = jnp.pad(memory_bank, ((0, 0), (0, Ts_p - Ts), (0, Dk_p - Dk)))

    # Pre-split linear_out weight (torch concat order is [c, query]) and pad.
    w_c = w_out[:, :Dk]
    w_q = w_out[:, Dk:]
    w_in_p = jnp.pad(w_in, ((0, Dk_p - Dk), (0, Dq_p - Dq)))
    w_c_p = jnp.pad(w_c, ((0, Dq_p - Dq), (0, Dk_p - Dk)))
    w_q_p = jnp.pad(w_q, ((0, Dq_p - Dq), (0, Dq_p - Dq)))

    lens3 = jnp.asarray(memory_lengths, jnp.int32).reshape(B, 1, 1)

    if block_b is None:
        block_b = _pick_block_b(B, Tq_p, Ts_p, Dq_p, Dk_p)
    assert B % block_b == 0

    # Explicit VMEM budget (covers v5e 16 MiB default scoped limit, stays under
    # v7x 64 MiB physical).
    data_bytes = 2 * block_b * (2 * Tq_p * Dq_p + Ts_p * Dk_p + 2 * Tq_p * Ts_p) * 4
    weight_bytes = 2 * (Dk_p * Dq_p + Dq_p * Dk_p + Dq_p * Dq_p) * 4
    vmem_limit = int(min(max(data_bytes + weight_bytes + (4 << 20), 32 << 20),
                         56 << 20))

    out_shapes = (
        jax.ShapeDtypeStruct((B, Tq_p, Dq_p), jnp.float32),   # attn_h (padded)
        jax.ShapeDtypeStruct((B, Tq_p, Ts_p), jnp.float32),   # align_vectors (padded)
        jax.ShapeDtypeStruct((B, Tq_p, Ts_p), jnp.float32),   # align raw, masked (padded)
    )

    # NOTE: for production-sized weights (>= 512x512), consider
    # pipeline_mode=pl.Buffered(1) on the three constant-index weight specs so
    # they are not double-buffered (reclaims VMEM on v7x's 64 MiB).
    grid_spec = pltpu.PrefetchScalarGridSpec(
        num_scalar_prefetch=0,
        grid=(B // block_b,),
        in_specs=[
            pl.BlockSpec((block_b, 1, 1), lambda i: (i, 0, 0)),        # lengths
            pl.BlockSpec((block_b, Tq_p, Dq_p), lambda i: (i, 0, 0)),  # query
            pl.BlockSpec((block_b, Ts_p, Dk_p), lambda i: (i, 0, 0)),  # memory_bank
            pl.BlockSpec((Dk_p, Dq_p), lambda i: (0, 0)),              # w_in
            pl.BlockSpec((Dq_p, Dk_p), lambda i: (0, 0)),              # w_c
            pl.BlockSpec((Dq_p, Dq_p), lambda i: (0, 0)),              # w_q
        ],
        out_specs=[
            pl.BlockSpec((block_b, Tq_p, Dq_p), lambda i: (i, 0, 0)),
            pl.BlockSpec((block_b, Tq_p, Ts_p), lambda i: (i, 0, 0)),
            pl.BlockSpec((block_b, Tq_p, Ts_p), lambda i: (i, 0, 0)),
        ],
    )

    attn_h_p, av_p, align_p = pl.pallas_call(
        _global_attn_kernel,
        out_shape=out_shapes,
        grid_spec=grid_spec,
        compiler_params=pltpu.CompilerParams(
            dimension_semantics=("parallel",),       # batch blocks independent
            vmem_limit_bytes=vmem_limit),
    )(lens3, q_p, k_p, w_in_p, w_c_p, w_q_p)

    # slice the padding off (pure XLA)
    attn_h = attn_h_p[:, :Tq, :Dq]
    align_vectors = av_p[:, :Tq, :Ts]
    align = align_p[:, :Tq, :Ts]
    return attn_h, align_vectors, align


def _reference(query, memory_bank, memory_lengths, w_in, w_out):
    """Pure-JAX reference mirroring the PyTorch forward."""
    B, Tq, Dq = query.shape
    _, Ts, Dk = memory_bank.shape
    q_t = jnp.einsum("btq,kq->btk", query, w_in)                 # linear_in
    align = jnp.einsum("btk,bsk->bts", q_t, memory_bank)         # bmm
    mask = jnp.arange(Ts)[None, None, :] < memory_lengths[:, None, None]
    align = jnp.where(mask, align, -jnp.inf)
    av = jax.nn.softmax(align, axis=-1)
    c = jnp.einsum("bts,bsk->btk", av, memory_bank)
    concat = jnp.concatenate([c, query], axis=-1)                # (B,Tq,Dk+Dq)
    attn_h = jnp.tanh(jnp.einsum("btc,qc->btq", concat, w_out))
    return attn_h, av, align


if __name__ == "__main__":
    B, Tq, Ts = 8, 8, 8
    Dq, Dk = 32, 16

    key = jax.random.PRNGKey(0)
    kq, km, kwi, kwo = jax.random.split(key, 4)

    query = jax.random.normal(kq, (B, Tq, Dq), dtype=jnp.float32)
    memory_bank = jax.random.normal(km, (B, Ts, Dk), dtype=jnp.float32)
    memory_lengths = jnp.array([Ts, 5, Ts, 3, Ts, 6, 7, 1], dtype=jnp.int32)

    # Deterministic "nn.Linear" weights (torch layout [out_features, in_features])
    w_in = jax.random.normal(kwi, (Dk, Dq), dtype=jnp.float32) * 0.1        # linear_in
    w_out = jax.random.normal(kwo, (Dq, Dk + Dq), dtype=jnp.float32) * 0.1  # linear_out

    attn_h, align_vectors, align = jax.block_until_ready(
        global_attention(query, memory_bank, memory_lengths, w_in, w_out))

    ref_h, ref_av, ref_align = _reference(query, memory_bank, memory_lengths,
                                          w_in, w_out)

    assert jnp.allclose(attn_h, ref_h, atol=1e-5, rtol=1e-5)
    assert jnp.allclose(align_vectors, ref_av, atol=1e-5, rtol=1e-5)
    # compare raw scores only on unmasked positions (-inf elsewhere)
    mask = jnp.arange(Ts)[None, None, :] < memory_lengths[:, None, None]
    assert jnp.allclose(jnp.where(mask, align, 0.0),
                        jnp.where(mask, ref_align, 0.0), atol=1e-5, rtol=1e-5)

    print("KERNEL_OK")
</pallas_src>

<mosaic_0001>
module attributes {stable_mosaic.version = 11 : i64} {
  func.func @_global_attn_kernel(%arg0: i32, %arg1: memref<4x1x1xi32, #tpu.memory_space<vmem>>, %arg2: memref<4x8x128xf32, #tpu.memory_space<vmem>>, %arg3: memref<4x128x128xf32, #tpu.memory_space<vmem>>, %arg4: memref<128x128xf32, #tpu.memory_space<vmem>>, %arg5: memref<128x128xf32, #tpu.memory_space<vmem>>, %arg6: memref<128x128xf32, #tpu.memory_space<vmem>>, %arg7: memref<4x8x128xf32, #tpu.memory_space<vmem>>, %arg8: memref<4x8x128xf32, #tpu.memory_space<vmem>>, %arg9: memref<4x8x128xf32, #tpu.memory_space<vmem>>) attributes {dimension_semantics = [#tpu.dimension_semantics<parallel>], iteration_bounds = array<i64: 2>, scalar_prefetch = 0 : i64, scratch_operands = 0 : i64, tpu.core_type = #tpu.core_type<tc>, window_params = [{transform_indices = @transform_0, window_bounds = array<i64: 4, 1, 1>}, {transform_indices = @transform_1, window_bounds = array<i64: 4, 8, 128>}, {transform_indices = @transform_2, window_bounds = array<i64: 4, 128, 128>}, {pipeline_mode = #tpu.pipeline_mode<synchronous>, transform_indices = @transform_3, window_bounds = array<i64: 128, 128>}, {pipeline_mode = #tpu.pipeline_mode<synchronous>, transform_indices = @transform_4, window_bounds = array<i64: 128, 128>}, {pipeline_mode = #tpu.pipeline_mode<synchronous>, transform_indices = @transform_5, window_bounds = array<i64: 128, 128>}, {transform_indices = @transform_6, window_bounds = array<i64: 4, 8, 128>}, {transform_indices = @transform_7, window_bounds = array<i64: 4, 8, 128>}, {transform_indices = @transform_8, window_bounds = array<i64: 4, 8, 128>}]} {
    %c0 = arith.constant 0 : index
    %c0_0 = arith.constant 0 : index
    %c0_1 = arith.constant 0 : index
    %0 = vector.load %arg2[%c0, %c0_0, %c0_1] : memref<4x8x128xf32, #tpu.memory_space<vmem>>, vector<4x8x128xf32>
    %c0_2 = arith.constant 0 : index
    %c0_3 = arith.constant 0 : index
    %c0_4 = arith.constant 0 : index
    %1 = vector.load %arg3[%c0_2, %c0_3, %c0_4] : memref<4x128x128xf32, #tpu.memory_space<vmem>>, vector<4x128x128xf32>
    %c0_5 = arith.constant 0 : index
    %c0_6 = arith.constant 0 : index
    %2 = vector.load %arg4[%c0_5, %c0_6] : memref<128x128xf32, #tpu.memory_space<vmem>>, vector<128x128xf32>
    %c0_7 = arith.constant 0 : index
    %c0_8 = arith.constant 0 : index
    %3 = vector.load %arg5[%c0_7, %c0_8] : memref<128x128xf32, #tpu.memory_space<vmem>>, vector<128x128xf32>
    %c0_9 = arith.constant 0 : index
    %c0_10 = arith.constant 0 : index
    %4 = vector.load %arg6[%c0_9, %c0_10] : memref<128x128xf32, #tpu.memory_space<vmem>>, vector<128x128xf32>
    %5 = vector.shape_cast %0 : vector<4x8x128xf32> to vector<32x128xf32>
    %cst = arith.constant dense<0.000000e+00> : vector<32x128xf32>
    %6 = tpu.matmul %5, %2, %cst {dimension_numbers = #tpu.dot_dimension_numbers<[1], [1], [0], [0], [0, 0, 1, 0], [], []>} : vector<32x128xf32>, vector<128x128xf32>, vector<32x128xf32> -> vector<32x128xf32>
    %7 = vector.shape_cast %6 : vector<32x128xf32> to vector<4x8x128xf32>
    %cst_11 = arith.constant dense<0.000000e+00> : vector<4x8x128xf32>
    %8 = tpu.matmul %7, %1, %cst_11 {dimension_numbers = #tpu.dot_dimension_numbers<[2], [2], [1], [1], [0, 0, 0, 1, 1, 1], [0], [0]>} : vector<4x8x128xf32>, vector<4x128x128xf32>, vector<4x8x128xf32> -> vector<4x8x128xf32>
    %9 = tpu.iota {dimensions = array<i32: 2>} : vector<4x8x128xi32>
    %c0_12 = arith.constant 0 : index
    %c0_13 = arith.constant 0 : index
    %c0_14 = arith.constant 0 : index
    %10 = vector.load %arg1[%c0_12, %c0_13, %c0_14] : memref<4x1x1xi32, #tpu.memory_space<vmem>>, vector<4x1x1xi32>
    %11 = vector.broadcast %10 : vector<4x1x1xi32> to vector<4x8x128xi32>
    %12 = arith.cmpi slt, %9, %11 : vector<4x8x128xi32>
    %cst_15 = arith.constant 0xFF800000 : f32
    %13 = vector.broadcast %cst_15 : f32 to vector<4x8x128xf32>
    %14 = arith.select %12, %8, %13 : vector<4x8x128xi1>, vector<4x8x128xf32>
    %cst_16 = arith.constant dense<0xFF800000> : vector<4x8xf32>
    %15 = vector.multi_reduction <maximumf>, %14, %cst_16 [2] : vector<4x8x128xf32> to vector<4x8xf32>
    %16 = vector.shape_cast %15 : vector<4x8xf32> to vector<4x8x1xf32>
    %17 = vector.broadcast %16 : vector<4x8x1xf32> to vector<4x8x128xf32>
    %18 = arith.subf %14, %17 : vector<4x8x128xf32>
    %19 = math.exp %18 : vector<4x8x128xf32>
    %cst_17 = arith.constant dense<0.000000e+00> : vector<4x8xf32>
    %20 = vector.multi_reduction <add>, %19, %cst_17 [2] : vector<4x8x128xf32> to vector<4x8xf32>
    %21 = vector.shape_cast %20 : vector<4x8xf32> to vector<4x8x1xf32>
    %cst_18 = arith.constant 1.000000e+00 : f32
    %22 = vector.broadcast %cst_18 : f32 to vector<4x8x1xf32>
    %23 = arith.divf %22, %21 : vector<4x8x1xf32>
    %24 = vector.broadcast %23 : vector<4x8x1xf32> to vector<4x8x128xf32>
    %25 = arith.mulf %19, %24 : vector<4x8x128xf32>
    %cst_19 = arith.constant dense<0.000000e+00> : vector<4x8x128xf32>
    %26 = tpu.matmul %25, %1, %cst_19 {dimension_numbers = #tpu.dot_dimension_numbers<[2], [1], [1], [2], [0, 0, 0, 1, 1, 2], [0], [0]>} : vector<4x8x128xf32>, vector<4x128x128xf32>, vector<4x8x128xf32> -> vector<4x8x128xf32>
    %27 = vector.shape_cast %26 : vector<4x8x128xf32> to vector<32x128xf32>
    %cst_20 = arith.constant dense<0.000000e+00> : vector<32x128xf32>
    %28 = tpu.matmul %27, %3, %cst_20 {dimension_numbers = #tpu.dot_dimension_numbers<[1], [1], [0], [0], [0, 0, 1, 0], [], []>} : vector<32x128xf32>, vector<128x128xf32>, vector<32x128xf32> -> vector<32x128xf32>
    %cst_21 = arith.constant dense<0.000000e+00> : vector<32x128xf32>
    %29 = tpu.matmul %5, %4, %cst_21 {dimension_numbers = #tpu.dot_dimension_numbers<[1], [1], [0], [0], [0, 0, 1, 0], [], []>} : vector<32x128xf32>, vector<128x128xf32>, vector<32x128xf32> -> vector<32x128xf32>
    %30 = arith.addf %28, %29 : vector<32x128xf32>
    %31 = math.tanh %30 : vector<32x128xf32>
    %32 = vector.shape_cast %31 : vector<32x128xf32> to vector<4x8x128xf32>
    %c0_22 = arith.constant 0 : index
    %c0_23 = arith.constant 0 : index
    %c0_24 = arith.constant 0 : index
    %33 = vector.load %arg7[%c0_22, %c0_23, %c0_24] : memref<4x8x128xf32, #tpu.memory_space<vmem>>, vector<4x8x128xf32>
    tpu.vector_store %arg7[%c0_22, %c0_23, %c0_24], %32 {strides = array<i32>} : memref<4x8x128xf32, #tpu.memory_space<vmem>>, vector<4x8x128xf32>,
    %c0_25 = arith.constant 0 : index
    %c0_26 = arith.constant 0 : index
    %c0_27 = arith.constant 0 : index
    %34 = vector.load %arg8[%c0_25, %c0_26, %c0_27] : memref<4x8x128xf32, #tpu.memory_space<vmem>>, vector<4x8x128xf32>
    tpu.vector_store %arg8[%c0_25, %c0_26, %c0_27], %25 {strides = array<i32>} : memref<4x8x128xf32, #tpu.memory_space<vmem>>, vector<4x8x128xf32>,
    %c0_28 = arith.constant 0 : index
    %c0_29 = arith.constant 0 : index
    %c0_30 = arith.constant 0 : index
    %35 = vector.load %arg9[%c0_28, %c0_29, %c0_30] : memref<4x8x128xf32, #tpu.memory_space<vmem>>, vector<4x8x128xf32>
    tpu.vector_store %arg9[%c0_28, %c0_29, %c0_30], %14 {strides = array<i32>} : memref<4x8x128xf32, #tpu.memory_space<vmem>>, vector<4x8x128xf32>,
    return
  }
  func.func @transform_0(%arg0: i32) -> (i32, i32, i32) {
    %c0_i32 = arith.constant 0 : i32
    %c0_i32_0 = arith.constant 0 : i32
    %c0_i32_1 = arith.constant 0 : i32
    return %arg0, %c0_i32, %c0_i32_0 : i32, i32, i32
  }
  func.func @transform_1(%arg0: i32) -> (i32, i32, i32) {
    %c0_i32 = arith.constant 0 : i32
    %c0_i32_0 = arith.constant 0 : i32
    %c0_i32_1 = arith.constant 0 : i32
    return %arg0, %c0_i32, %c0_i32_0 : i32, i32, i32
  }
  func.func @transform_2(%arg0: i32) -> (i32, i32, i32) {
    %c0_i32 = arith.constant 0 : i32
    %c0_i32_0 = arith.constant 0 : i32
    %c0_i32_1 = arith.constant 0 : i32
    return %arg0, %c0_i32, %c0_i32_0 : i32, i32, i32
  }
  func.func @transform_3(%arg0: i32) -> (i32, i32) {
    %c0_i32 = arith.constant 0 : i32
    %c0_i32_0 = arith.constant 0 : i32
    %c0_i32_1 = arith.constant 0 : i32
    return %c0_i32, %c0_i32_0 : i32, i32
  }
  func.func @transform_4(%arg0: i32) -> (i32, i32) {
    %c0_i32 = arith.constant 0 : i32
    %c0_i32_0 = arith.constant 0 : i32
    %c0_i32_1 = arith.constant 0 : i32
    return %c0_i32, %c0_i32_0 : i32, i32
  }
  func.func @transform_5(%arg0: i32) -> (i32, i32) {
    %c0_i32 = arith.constant 0 : i32
    %c0_i32_0 = arith.constant 0 : i32
    %c0_i32_1 = arith.constant 0 : i32
    return %c0_i32, %c0_i32_0 : i32, i32
  }
  func.func @transform_6(%arg0: i32) -> (i32, i32, i32) {
    %c0_i32 = arith.constant 0 : i32
    %c0_i32_0 = arith.constant 0 : i32
    %c0_i32_1 = arith.constant 0 : i32
    return %arg0, %c0_i32, %c0_i32_0 : i32, i32, i32
  }
  func.func @transform_7(%arg0: i32) -> (i32, i32, i32) {
    %c0_i32 = arith.constant 0 : i32
    %c0_i32_0 = arith.constant 0 : i32
    %c0_i32_1 = arith.constant 0 : i32
    return %arg0, %c0_i32, %c0_i32_0 : i32, i32, i32
  }
  func.func @transform_8(%arg0: i32) -> (i32, i32, i32) {
    %c0_i32 = arith.constant 0 : i32
    %c0_i32_0 = arith.constant 0 : i32
    %c0_i32_1 = arith.constant 0 : i32
    return %arg0, %c0_i32, %c0_i32_0 : i32, i32, i32
  }
}

</mosaic_0001>

<llo_original>
// kernel: tpu_custom_call.1
$region0: #{tpu_custom_call.1}
  #allocation0 [shape = 'u32[]', space=smem, size = 0x4, offset = 0x4, fixed_abs, tag = 'smem constant byte address 0x4 - core index']
  #allocation1 [shape = 'u32[144,128]{1,0:T(1,128)}', space=vmem, size = 0x12000, scoped, tag = 'internal scratch']
  %s0 = inlined_call_operand.vmem [shape: s32[8,1,1], index: 0, kind: input, shape index: {}]
  %s1 = inlined_call_operand.hbm [shape: f32[8,8,128], index: 1, kind: input, shape index: {}]
  %s2 = inlined_call_operand.hbm [shape: f32[8,128,128], index: 2, kind: input, shape index: {}]
  %s3 = inlined_call_operand.hbm [shape: f32[128,128], index: 3, kind: input, shape index: {}]
  %s4 = inlined_call_operand.hbm [shape: f32[128,128], index: 4, kind: input, shape index: {}]
  %s5 = inlined_call_operand.hbm [shape: f32[128,128], index: 5, kind: input, shape index: {}]
  %s6 = inlined_call_operand.hbm [shape: f32[8,8,128], index: 6, kind: output, shape index: {0}]
  %s7 = inlined_call_operand.hbm [shape: f32[8,8,128], index: 7, kind: output, shape index: {1}]
  %s8 = inlined_call_operand.hbm [shape: f32[8,8,128], index: 8, kind: output, shape index: {2}]
  %9 = xla_tuple %s6, %s7, %s8
  %s10 = sld [smem:[#allocation0]]
  $region93: #{tpu_custom_call.1} parent=0
    _
  %s12 = ssub.s32 1, %s10
  %s13 = scalar_select 0, %s12, %s10
  $region1: #{tpu_custom_call.1} parent=0
    #allocation2 [shape = 'u8[32768]{0}', space=vmem, size = 0x8000, scoped, tag = 'input window, operand 1']
    #allocation3 [shape = 's32[2]{0}', space=sflag, size = 0x8, scoped, tag = 'scoped memory for tpu_custom_call.1']
    #allocation4 [shape = 's32[2]{0}', space=sflag, size = 0x8, scoped, tag = 'scoped memory for tpu_custom_call.1']
    #allocation5 [shape = 'u8[524288]{0}', space=vmem, size = 0x80000, scoped, tag = 'input window, operand 2']
    #allocation6 [shape = 's32[2]{0}', space=sflag, size = 0x8, scoped, tag = 'scoped memory for tpu_custom_call.1']
    #allocation7 [shape = 'u8[65536]{0}', space=vmem, size = 0x10000, scoped, tag = 'input window, operand 3, single buffered']
    #allocation8 [shape = 'u8[65536]{0}', space=vmem, size = 0x10000, scoped, tag = 'input window, operand 4, single buffered']
    #allocation9 [shape = 's32[1]{0}', space=sflag, size = 0x4, scoped, tag = 'scoped memory for tpu_custom_call.1']
    #allocation10 [shape = 'u8[65536]{0}', space=vmem, size = 0x10000, scoped, tag = 'input window, operand 5, single buffered']
    #allocation11 [shape = 'u8[32768]{0}', space=vmem, size = 0x8000, scoped, tag = 'output window, operand 0']
    #allocation12 [shape = 'u8[32768]{0}', space=vmem, size = 0x8000, scoped, tag = 'output window, operand 1']
    #allocation13 [shape = 's32[2]{0}', space=sflag, size = 0x8, scoped, tag = 'scoped memory for tpu_custom_call.1']
    #allocation14 [shape = 'u8[32768]{0}', space=vmem, size = 0x8000, scoped, tag = 'output window, operand 2']
    %14 = vsyncpa [#allocation3], 0
    %s15 = scalar_lea.sflag [#allocation3], 1
    %16 = vsyncpa %s15, 0
    %17 = vsyncpa [#allocation6], 0
    %s18 = scalar_lea.sflag [#allocation6], 1
    %19 = vsyncpa %s18, 0
    %20 = vsyncpa [#allocation9], 0
    %21 = vsyncpa [#allocation4], 0
    %s22 = scalar_lea.sflag [#allocation4], 1
    %23 = vsyncpa %s22, 0
    %24 = vsyncpa [#allocation13], 0
    %s25 = scalar_lea.sflag [#allocation13], 1
    %26 = vsyncpa %s25, 0
    loop: start=0, step=1, limit=4
    $region2: #{tpu_custom_call.1} parent=1 // loop_pre_header
      _
    $region3: #{tpu_custom_call.1} parent=1 // loop_header
      %s28 = sphi 0, %s32
      %p29 = scmp.ge.s32.totalorder %s28, 4
      %s38 = sphi 0, %s40
      %s41 = sphi 0, %s38
      %s42 = sphi 0, %s41
      %s58 = sphi 0, %s42
      %s64 = sphi 0, %s66
      %s67 = sphi 0, %s64
      %s68 = sphi 0, %s67
      %s84 = sphi 0, %s68
      %s90 = sphi 0, %s92
      %s93 = sphi 0, %s90
      %s94 = sphi 0, %s93
      %s110 = sphi 0, %s94
      %s114 = sphi 0, %s114
      %s116 = sphi 0, %s114
      %s117 = sphi 0, %s116
      %s131 = sphi 0, %s117
      %s135 = sphi 0, %s135
      %s137 = sphi 0, %s135
      %s138 = sphi 0, %s137
      %s152 = sphi 0, %s138
      %s156 = sphi 0, %s156
      %s158 = sphi 0, %s156
      %s159 = sphi 0, %s158
      %s173 = sphi 0, %s159
      %s179 = sphi 0, %s181
      %s182 = sphi 0, %s179
      %s183 = sphi 0, %s182
      %s199 = sphi 0, %s183
      %s205 = sphi 0, %s207
      %s208 = sphi 0, %s205
      %s209 = sphi 0, %s208
      %s225 = sphi 0, %s209
      %s231 = sphi 0, %s233
      %s234 = sphi 0, %s231
      %s235 = sphi 0, %s234
      %s251 = sphi 0, %s235
    $region4: #{tpu_custom_call.1} parent=1 // loop_header_branch
      %31 = sbr.rel (%p29) target = $region8
    $region5: #{tpu_custom_call.1} parent=1 // loop_body
      %s33 = ssub.s32 %s28, 1
      %s34 = ssub.s32 %s28, 2
      %s35 = sadd.s32 %s28, 1
      %s36 = ssub.s32 %s28, %s35
      %p37 = scmp.eq.s32.totalorder %s36, 0
      %s39 = sadd.s32 %s38, 1
      %s40 = scalar_select %p37, %s38, %s39
      %p43 = pneg %p37
      %p44 = scmp.eq.s32.totalorder %s28, 1
      %p45 = por %p43, %p44
      %p46 = scmp.ne.s32.totalorder %s38, %s41
      %p47 = scmp.eq.s32.totalorder %s28, 0
      %p48 = por %p46, %p47
      %p49 = scmp.ne.s32.totalorder %s38, %s41
      %p50 = scmp.eq.s32.totalorder %s33, 1
      %p51 = por %p49, %p50
      %p52 = scmp.ne.s32.totalorder %s41, %s42
      %p53 = scmp.eq.s32.totalorder %s33, 0
      %p54 = por %p52, %p53
      %p55 = scmp.ne.s32.totalorder %s41, %s42
      %p56 = scmp.eq.s32.totalorder %s34, 1
      %p57 = por %p55, %p56
      %p59 = scmp.ne.s32.totalorder %s42, %s58
      %p60 = scmp.eq.s32.totalorder %s34, 0
      %p61 = por %p59, %p60
      %s62 = ssub.s32 %s28, %s35
      %p63 = scmp.eq.s32.totalorder %s62, 0
      %s65 = sadd.s32 %s64, 1
      %s66 = scalar_select %p63, %s64, %s65
      %p69 = pneg %p63
      %p70 = scmp.eq.s32.totalorder %s28, 1
      %p71 = por %p69, %p70
      %p72 = scmp.ne.s32.totalorder %s64, %s67
      %p73 = scmp.eq.s32.totalorder %s28, 0
      %p74 = por %p72, %p73
      %p75 = scmp.ne.s32.totalorder %s64, %s67
      %p76 = scmp.eq.s32.totalorder %s33, 1
      %p77 = por %p75, %p76
      %p78 = scmp.ne.s32.totalorder %s67, %s68
      %p79 = scmp.eq.s32.totalorder %s33, 0
      %p80 = por %p78, %p79
      %p81 = scmp.ne.s32.totalorder %s67, %s68
      %p82 = scmp.eq.s32.totalorder %s34, 1
      %p83 = por %p81, %p82
      %p85 = scmp.ne.s32.totalorder %s68, %s84
      %p86 = scmp.eq.s32.totalorder %s34, 0
      %p87 = por %p85, %p86
      %s88 = ssub.s32 %s28, %s35
      %p89 = scmp.eq.s32.totalorder %s88, 0
      %s91 = sadd.s32 %s90, 1
      %s92 = scalar_select %p89, %s90, %s91
      %p95 = pneg %p89
      %p96 = scmp.eq.s32.totalorder %s28, 1
      %p97 = por %p95, %p96
      %p98 = scmp.ne.s32.totalorder %s90, %s93
      %p99 = scmp.eq.s32.totalorder %s28, 0
      %p100 = por %p98, %p99
      %p101 = scmp.ne.s32.totalorder %s90, %s93
      %p102 = scmp.eq.s32.totalorder %s33, 1
      %p103 = por %p101, %p102
      %p104 = scmp.ne.s32.totalorder %s93, %s94
      %p105 = scmp.eq.s32.totalorder %s33, 0
      %p106 = por %p104, %p105
      %p107 = scmp.ne.s32.totalorder %s93, %s94
      %p108 = scmp.eq.s32.totalorder %s34, 1
      %p109 = por %p107, %p108
      %p111 = scmp.ne.s32.totalorder %s94, %s110
      %p112 = scmp.eq.s32.totalorder %s34, 0
      %p113 = por %p111, %p112
      %s115 = sadd.s32 %s114, 1
      %p118 = scmp.eq.s32.totalorder %s28, 1
      %p119 = scmp.ne.s32.totalorder %s114, %s116
      %p120 = scmp.eq.s32.totalorder %s28, 0
      %p121 = por %p119, %p120
      %p122 = scmp.ne.s32.totalorder %s114, %s116
      %p123 = scmp.eq.s32.totalorder %s33, 1
      %p124 = por %p122, %p123
      %p125 = scmp.ne.s32.totalorder %s116, %s117
      %p126 = scmp.eq.s32.totalorder %s33, 0
      %p127 = por %p125, %p126
      %p128 = scmp.ne.s32.totalorder %s116, %s117
      %p129 = scmp.eq.s32.totalorder %s34, 1
      %p130 = por %p128, %p129
      %p132 = scmp.ne.s32.totalorder %s117, %s131
      %p133 = scmp.eq.s32.totalorder %s34, 0
      %p134 = por %p132, %p133
      %s136 = sadd.s32 %s135, 1
      %p139 = scmp.eq.s32.totalorder %s28, 1
      %p140 = scmp.ne.s32.totalorder %s135, %s137
      %p141 = scmp.eq.s32.totalorder %s28, 0
      %p142 = por %p140, %p141
      %p143 = scmp.ne.s32.totalorder %s135, %s137
      %p144 = scmp.eq.s32.totalorder %s33, 1
      %p145 = por %p143, %p144
      %p146 = scmp.ne.s32.totalorder %s137, %s138
      %p147 = scmp.eq.s32.totalorder %s33, 0
      %p148 = por %p146, %p147
      %p149 = scmp.ne.s32.totalorder %s137, %s138
      %p150 = scmp.eq.s32.totalorder %s34, 1
      %p151 = por %p149, %p150
      %p153 = scmp.ne.s32.totalorder %s138, %s152
      %p154 = scmp.eq.s32.totalorder %s34, 0
      %p155 = por %p153, %p154
      %s157 = sadd.s32 %s156, 1
      %p160 = scmp.eq.s32.totalorder %s28, 1
      %p161 = scmp.ne.s32.totalorder %s156, %s158
      %p162 = scmp.eq.s32.totalorder %s28, 0
      %p163 = por %p161, %p162
      %p164 = scmp.ne.s32.totalorder %s156, %s158
      %p165 = scmp.eq.s32.totalorder %s33, 1
      %p166 = por %p164, %p165
      %p167 = scmp.ne.s32.totalorder %s158, %s159
      %p168 = scmp.eq.s32.totalorder %s33, 0
      %p169 = por %p167, %p168
      %p170 = scmp.ne.s32.totalorder %s158, %s159
      %p171 = scmp.eq.s32.totalorder %s34, 1
      %p172 = por %p170, %p171
      %p174 = scmp.ne.s32.totalorder %s159, %s173
      %p175 = scmp.eq.s32.totalorder %s34, 0
      %p176 = por %p174, %p175
      %s177 = ssub.s32 %s28, %s35
      %p178 = scmp.eq.s32.totalorder %s177, 0
      %s180 = sadd.s32 %s179, 1
      %s181 = scalar_select %p178, %s179, %s180
      %p184 = pneg %p178
      %p185 = scmp.eq.s32.totalorder %s28, 1
      %p186 = por %p184, %p185
      %p187 = scmp.ne.s32.totalorder %s179, %s182
      %p188 = scmp.eq.s32.totalorder %s28, 0
      %p189 = por %p187, %p188
      %p190 = scmp.ne.s32.totalorder %s179, %s182
      %p191 = scmp.eq.s32.totalorder %s33, 1
      %p192 = por %p190, %p191
      %p193 = scmp.ne.s32.totalorder %s182, %s183
      %p194 = scmp.eq.s32.totalorder %s33, 0
      %p195 = por %p193, %p194
      %p196 = scmp.ne.s32.totalorder %s182, %s183
      %p197 = scmp.eq.s32.totalorder %s34, 1
      %p198 = por %p196, %p197
      %p200 = scmp.ne.s32.totalorder %s183, %s199
      %p201 = scmp.eq.s32.totalorder %s34, 0
      %p202 = por %p200, %p201
      %s203 = ssub.s32 %s28, %s35
      %p204 = scmp.eq.s32.totalorder %s203, 0
      %s206 = sadd.s32 %s205, 1
      %s207 = scalar_select %p204, %s205, %s206
      %p210 = pneg %p204
      %p211 = scmp.eq.s32.totalorder %s28, 1
      %p212 = por %p210, %p211
      %p213 = scmp.ne.s32.totalorder %s205, %s208
      %p214 = scmp.eq.s32.totalorder %s28, 0
      %p215 = por %p213, %p214
      %p216 = scmp.ne.s32.totalorder %s205, %s208
      %p217 = scmp.eq.s32.totalorder %s33, 1
      %p218 = por %p216, %p217
      %p219 = scmp.ne.s32.totalorder %s208, %s209
      %p220 = scmp.eq.s32.totalorder %s33, 0
      %p221 = por %p219, %p220
      %p222 = scmp.ne.s32.totalorder %s208, %s209
      %p223 = scmp.eq.s32.totalorder %s34, 1
      %p224 = por %p222, %p223
      %p226 = scmp.ne.s32.totalorder %s209, %s225
      %p227 = scmp.eq.s32.totalorder %s34, 0
      %p228 = por %p226, %p227
      %s229 = ssub.s32 %s28, %s35
      %p230 = scmp.eq.s32.totalorder %s229, 0
      %s232 = sadd.s32 %s231, 1
      %s233 = scalar_select %p230, %s231, %s232
      %p236 = pneg %p230
      %p237 = scmp.eq.s32.totalorder %s28, 1
      %p238 = por %p236, %p237
      %p239 = scmp.ne.s32.totalorder %s231, %s234
      %p240 = scmp.eq.s32.totalorder %s28, 0
      %p241 = por %p239, %p240
      %p242 = scmp.ne.s32.totalorder %s231, %s234
      %p243 = scmp.eq.s32.totalorder %s33, 1
      %p244 = por %p242, %p243
      %p245 = scmp.ne.s32.totalorder %s234, %s235
      %p246 = scmp.eq.s32.totalorder %s33, 0
      %p247 = por %p245, %p246
      %p248 = scmp.ne.s32.totalorder %s234, %s235
      %p249 = scmp.eq.s32.totalorder %s34, 1
      %p250 = por %p248, %p249
      %p252 = scmp.ne.s32.totalorder %s235, %s251
      %p253 = scmp.eq.s32.totalorder %s34, 0
      %p254 = por %p252, %p253
      %p255 = scmp.le.s32.totalorder 1, %s28
      %p256 = scmp.lt.s32.totalorder %s28, 3
      %p257 = pnand %p255, %p256
      %p258 = pneg %p257
      // Predicated region
      $region9: #{tpu_custom_call.1} parent=5 // pred_check
        _
      $region10: #{tpu_custom_call.1} parent=5 // pred_check_branch
        %260 = sbr.rel (%p257) target = $region12
      $region11: #{tpu_custom_call.1} parent=5 // pred_region
        %s261 = ssub.s32 %s28, 1
        // Predicated region
        $region13: #{tpu_custom_call.1} parent=11 // pred_check
          %p262 = pneg %p127
        $region14: #{tpu_custom_call.1} parent=11 // pred_check_branch
          %264 = sbr.rel (%p262) target = $region16
        $region15: #{tpu_custom_call.1} parent=11 // pred_region
          %s266 = ssub.s32 2048, 2048
          %267 = vsyncadd [#allocation6], %s266
          %s268 = sshll.u32 [#allocation7], 4
          %s269 = int_to_ptr.vmem [resolvable:$true] %s268
          %274 = dma.hbm_to_vmem [thread:$0]  %s3, 2048, %s269, [#allocation6], 128, 128, 8
        $region16: #{tpu_custom_call.1} parent=11 // pred_fallthru
          _
        // Predicated region
        $region17: #{tpu_custom_call.1} parent=11 // pred_check
          %p275 = pneg %p148
        $region18: #{tpu_custom_call.1} parent=11 // pred_check_branch
          %277 = sbr.rel (%p275) target = $region20
        $region19: #{tpu_custom_call.1} parent=11 // pred_region
          %s279 = ssub.s32 2048, 2048
          %280 = vsyncadd [#allocation9], %s279
          %s281 = sshll.u32 [#allocation8], 4
          %s282 = int_to_ptr.vmem [resolvable:$true] %s281
          %287 = dma.hbm_to_vmem [thread:$0]  %s4, 2048, %s282, [#allocation9], 128, 128, 8
        $region20: #{tpu_custom_call.1} parent=11 // pred_fallthru
          _
        // Predicated region
        $region21: #{tpu_custom_call.1} parent=11 // pred_check
          %p288 = pneg %p169
        $region22: #{tpu_custom_call.1} parent=11 // pred_check_branch
          %290 = sbr.rel (%p288) target = $region24
        $region23: #{tpu_custom_call.1} parent=11 // pred_region
          %s292 = ssub.s32 2048, 2048
          %293 = vsyncadd [#allocation9], %s292
          %s294 = sshll.u32 [#allocation10], 4
          %s295 = int_to_ptr.vmem [resolvable:$true] %s294
          %300 = dma.hbm_to_vmem [thread:$0]  %s5, 2048, %s295, [#allocation9], 128, 128, 8
        $region24: #{tpu_custom_call.1} parent=11 // pred_fallthru
          _
      $region12: #{tpu_custom_call.1} parent=5 // pred_fallthru
        _
      %p301 = scmp.lt.s32.totalorder %s28, 2
      // Predicated region
      $region25: #{tpu_custom_call.1} parent=5 // pred_check
        %p302 = pneg %p301
      $region26: #{tpu_custom_call.1} parent=5 // pred_check_branch
        %304 = sbr.rel (%p302) target = $region28
      $region27: #{tpu_custom_call.1} parent=5 // pred_region
        // Predicated region
        $region29: #{tpu_custom_call.1} parent=27 // pred_check
          %p305 = pneg %p48
        $region30: #{tpu_custom_call.1} parent=27 // pred_check_branch
          %307 = sbr.rel (%p305) target = $region32
        $region31: #{tpu_custom_call.1} parent=27 // pred_region
          %s308 = smul.u32 4, %s28
          %p309 = scmp.lt.s32.totalorder %s308, 7
          %s310 = scalar_select %p309, %s308, 7
          %s311 = scalar_lea.vmem %s0, %s310
          %s312 = smul.u32 4, %s28
        $region32: #{tpu_custom_call.1} parent=27 // pred_fallthru
          _
        // Predicated region
        $region33: #{tpu_custom_call.1} parent=27 // pred_check
          %p313 = pneg %p74
        $region34: #{tpu_custom_call.1} parent=27 // pred_check_branch
          %315 = sbr.rel (%p313) target = $region36
        $region35: #{tpu_custom_call.1} parent=27 // pred_region
          %s316 = sand.u32 %s64, 1
          %s317 = scalar_lea.sflag [#allocation3], %s316
          %s318 = sand.u32 %s64, 1
          %s319 = smul.addr %s318, 32
          %s320 = scalar_lea.vmem [#allocation2], %s319
          %s321 = smul.u32 4, %s28
          %s323 = ssub.s32 512, 512
          %324 = vsyncadd %s317, %s323
          %s325 = smul.addr %s321, 128
          %s326 = scalar_lea.hbm %s1, %s325
          %s327 = sshll.u32 %s320, 4
          %s328 = int_to_ptr.vmem [resolvable:$true] %s327
          %333 = dma.hbm_to_vmem [thread:$0]  %s326, 512, %s328, %s317, 128, 128, 8
        $region36: #{tpu_custom_call.1} parent=27 // pred_fallthru
          _
        // Predicated region
        $region37: #{tpu_custom_call.1} parent=27 // pred_check
          %p334 = pneg %p100
        $region38: #{tpu_custom_call.1} parent=27 // pred_check_branch
          %336 = sbr.rel (%p334) target = $region40
        $region39: #{tpu_custom_call.1} parent=27 // pred_region
          %s337 = sand.u32 %s28, 1
          %s338 = scalar_lea.sflag [#allocation6], %s337
          %s339 = sand.u32 %s90, 1
          %s340 = smul.addr %s339, 512
          %s341 = scalar_lea.vmem [#allocation5], %s340
          %s342 = smul.u32 4, %s28
          %s344 = ssub.s32 8192, 8192
          %345 = vsyncadd %s338, %s344
          %s346 = smul.addr %s342, 16
          %s347 = smul.addr %s346, 128
          %s348 = scalar_lea.hbm %s2, %s347
          %s349 = sshll.u32 %s341, 4
          %s350 = int_to_ptr.vmem [resolvable:$true] %s349
          %355 = dma.hbm_to_vmem [thread:$0]  %s348, 8192, %s350, %s338, 128, 128, 8
        $region40: #{tpu_custom_call.1} parent=27 // pred_fallthru
          _
      $region28: #{tpu_custom_call.1} parent=5 // pred_fallthru
        _
      %p356 = scmp.le.s32.totalorder 1, %s28
      %p357 = scmp.lt.s32.totalorder %s28, 3
      %p358 = pnand %p356, %p357
      %p359 = pneg %p358
      // Predicated region
      $region41: #{tpu_custom_call.1} parent=5 // pred_check
        _
      $region42: #{tpu_custom_call.1} parent=5 // pred_check_branch
        %361 = sbr.rel (%p358) target = $region44
      $region43: #{tpu_custom_call.1} parent=5 // pred_region
        %s362 = ssub.s32 %s28, 1
        %s363 = sand.u32 %s67, 1
        %s364 = scalar_lea.sflag [#allocation3], %s363
        %s365 = sand.u32 %s67, 1
        %s366 = smul.addr %s365, 32
        %s367 = scalar_lea.vmem [#allocation2], %s366
        // Predicated region
        $region45: #{tpu_custom_call.1} parent=43 // pred_check
          %p368 = pneg %p80
        $region46: #{tpu_custom_call.1} parent=43 // pred_check_branch
          %370 = sbr.rel (%p368) target = $region48
        $region47: #{tpu_custom_call.1} parent=43 // pred_region
          %371 = dma.done %s364, 512
        $region48: #{tpu_custom_call.1} parent=43 // pred_fallthru
          _
        %s372 = sand.u32 %s33, 1
        %s373 = scalar_lea.sflag [#allocation6], %s372
        %s374 = sand.u32 %s93, 1
        %s375 = smul.addr %s374, 512
        %s376 = scalar_lea.vmem [#allocation5], %s375
        // Predicated region
        $region49: #{tpu_custom_call.1} parent=43 // pred_check
          %p377 = pneg %p106
        $region50: #{tpu_custom_call.1} parent=43 // pred_check_branch
          %379 = sbr.rel (%p377) target = $region52
        $region51: #{tpu_custom_call.1} parent=43 // pred_region
          %380 = dma.done %s373, 8192
        $region52: #{tpu_custom_call.1} parent=43 // pred_fallthru
          _
        // Predicated region
        $region53: #{tpu_custom_call.1} parent=43 // pred_check
          %p381 = pneg %p127
        $region54: #{tpu_custom_call.1} parent=43 // pred_check_branch
          %383 = sbr.rel (%p381) target = $region56
        $region55: #{tpu_custom_call.1} parent=43 // pred_region
          %384 = dma.done [#allocation6], 2048
        $region56: #{tpu_custom_call.1} parent=43 // pred_fallthru
          _
        // Predicated region
        $region57: #{tpu_custom_call.1} parent=43 // pred_check
          %p385 = pneg %p148
        $region58: #{tpu_custom_call.1} parent=43 // pred_check_branch
          %387 = sbr.rel (%p385) target = $region60
        $region59: #{tpu_custom_call.1} parent=43 // pred_region
          %388 = dma.done [#allocation9], 2048
        $region60: #{tpu_custom_call.1} parent=43 // pred_fallthru
          _
        // Predicated region
        $region61: #{tpu_custom_call.1} parent=43 // pred_check
          %p389 = pneg %p169
        $region62: #{tpu_custom_call.1} parent=43 // pred_check_branch
          %391 = sbr.rel (%p389) target = $region64
        $region63: #{tpu_custom_call.1} parent=43 // pred_region
          %392 = dma.done [#allocation9], 2048
        $region64: #{tpu_custom_call.1} parent=43 // pred_fallthru
          _
        %s393 = smul.u32 4, %s33
        %p394 = scmp.lt.s32.totalorder %s393, 7
        %s395 = scalar_select %p394, %s393, 7
        %s396 = scalar_lea.vmem %s0, %s395
        %p397 = pneg %p54
        %p398 = pneg %p51
        %s399 = sand.u32 %s67, 1
        %s400 = scalar_lea.sflag [#allocation3], %s399
        %s401 = sand.u32 %s67, 1
        %s402 = smul.addr %s401, 32
        %s403 = scalar_lea.vmem [#allocation2], %s402
        %p404 = pneg %p80
        %p405 = pneg %p77
        %s406 = sand.u32 %s33, 1
        %s407 = scalar_lea.sflag [#allocation6], %s406
        %s408 = sand.u32 %s93, 1
        %s409 = smul.addr %s408, 512
        %s410 = scalar_lea.vmem [#allocation5], %s409
        %p411 = pneg %p106
        %p412 = pneg %p103
        %p413 = pneg %p127
        %p414 = pneg %p124
        %p415 = pneg %p148
        %p416 = pneg %p145
        %p417 = pneg %p169
        %p418 = pneg %p166
        %p419 = pneg %p195
        %p420 = pneg %p192
        %s421 = sand.u32 %s182, 1
        %s422 = scalar_lea.sflag [#allocation4], %s421
        %s423 = sand.u32 %s182, 1
        %s424 = smul.addr %s423, 32
        %s425 = scalar_lea.vmem [#allocation11], %s424
        %p426 = pneg %p221
        %p427 = pneg %p218
        %s428 = sand.u32 %s33, 1
        %s429 = scalar_lea.sflag [#allocation13], %s428
        %s430 = sand.u32 %s208, 1
        %s431 = smul.addr %s430, 32
        %s432 = scalar_lea.vmem [#allocation12], %s431
        %p433 = pneg %p247
        %p434 = pneg %p244
        %s435 = sand.u32 %s33, 1
        %s436 = scalar_lea.sflag [#allocation13], %s435
        %s437 = sand.u32 %s234, 1
        %s438 = smul.addr %s437, 32
        %s439 = scalar_lea.vmem [#allocation14], %s438
        %s440 = smul.u32 4, %s33
        %p441 = scmp.lt.s32.totalorder %s440, 7
        %s442 = scalar_select %p441, %s440, 7
        %s443 = scalar_lea.vmem %s0, %s442
        %s444 = smul.u32 4, %s33
        %s445 = smul.u32 4, %s33
        %s446 = smul.u32 4, %s33
        %s447 = smul.u32 4, %s33
        %s448 = smul.u32 4, %s33
        %s449 = smul.u32 4, %s33
        %v450 = vld [vmem:[%s367] sm:$0xff]
        %v451 = vld [vmem:[%s367 + $0x8] sm:$0xff]
        %v452 = vld [vmem:[%s367 + $0x10] sm:$0xff]
        %v453 = vld [vmem:[%s367 + $0x18] sm:$0xff]
        %v454 = vld [vmem:[%s376] sm:$0xff]
        %v455 = vld [vmem:[%s376 + $0x8] sm:$0xff]
        %v456 = vld [vmem:[%s376 + $0x10] sm:$0xff]
        %v457 = vld [vmem:[%s376 + $0x18] sm:$0xff]
        %v458 = vld [vmem:[%s376 + $0x20] sm:$0xff]
        %v459 = vld [vmem:[%s376 + $0x28] sm:$0xff]
        %v460 = vld [vmem:[%s376 + $0x30] sm:$0xff]
        %v461 = vld [vmem:[%s376 + $0x38] sm:$0xff]
        %v462 = vld [vmem:[%s376 + $0x40] sm:$0xff]
        %v463 = vld [vmem:[%s376 + $0x48] sm:$0xff]
        %v464 = vld [vmem:[%s376 + $0x50] sm:$0xff]
        %v465 = vld [vmem:[%s376 + $0x58] sm:$0xff]
        %v466 = vld [vmem:[%s376 + $0x60] sm:$0xff]
        %v467 = vld [vmem:[%s376 + $0x68] sm:$0xff]
        %v468 = vld [vmem:[%s376 + $0x70] sm:$0xff]
        %v469 = vld [vmem:[%s376 + $0x78] sm:$0xff]
        %v470 = vld [vmem:[%s376 + $0x80] sm:$0xff]
        %v471 = vld [vmem:[%s376 + $0x88] sm:$0xff]
        %v472 = vld [vmem:[%s376 + $0x90] sm:$0xff]
        %v473 = vld [vmem:[%s376 + $0x98] sm:$0xff]
        %v474 = vld [vmem:[%s376 + $0xa0] sm:$0xff]
        %v475 = vld [vmem:[%s376 + $0xa8] sm:$0xff]
        %v476 = vld [vmem:[%s376 + $0xb0] sm:$0xff]
        %v477 = vld [vmem:[%s376 + $0xb8] sm:$0xff]
        %v478 = vld [vmem:[%s376 + $0xc0] sm:$0xff]
        %v479 = vld [vmem:[%s376 + $0xc8] sm:$0xff]
        %v480 = vld [vmem:[%s376 + $0xd0] sm:$0xff]
        %v481 = vld [vmem:[%s376 + $0xd8] sm:$0xff]
        %v482 = vld [vmem:[%s376 + $0xe0] sm:$0xff]
        %v483 = vld [vmem:[%s376 + $0xe8] sm:$0xff]
        %v484 = vld [vmem:[%s376 + $0xf0] sm:$0xff]
        %v485 = vld [vmem:[%s376 + $0xf8] sm:$0xff]
        %v486 = vld [vmem:[%s376 + $0x100] sm:$0xff]
        %v487 = vld [vmem:[%s376 + $0x108] sm:$0xff]
        %v488 = vld [vmem:[%s376 + $0x110] sm:$0xff]
        %v489 = vld [vmem:[%s376 + $0x118] sm:$0xff]
        %v490 = vld [vmem:[%s376 + $0x120] sm:$0xff]
        %v491 = vld [vmem:[%s376 + $0x128] sm:$0xff]
        %v492 = vld [vmem:[%s376 + $0x130] sm:$0xff]
        %v493 = vld [vmem:[%s376 + $0x138] sm:$0xff]
        %v494 = vld [vmem:[%s376 + $0x140] sm:$0xff]
        %v495 = vld [vmem:[%s376 + $0x148] sm:$0xff]
        %v496 = vld [vmem:[%s376 + $0x150] sm:$0xff]
        %v497 = vld [vmem:[%s376 + $0x158] sm:$0xff]
        %v498 = vld [vmem:[%s376 + $0x160] sm:$0xff]
        %v499 = vld [vmem:[%s376 + $0x168] sm:$0xff]
        %v500 = vld [vmem:[%s376 + $0x170] sm:$0xff]
        %v501 = vld [vmem:[%s376 + $0x178] sm:$0xff]
        %v502 = vld [vmem:[%s376 + $0x180] sm:$0xff]
        %v503 = vld [vmem:[%s376 + $0x188] sm:$0xff]
        %v504 = vld [vmem:[%s376 + $0x190] sm:$0xff]
        %v505 = vld [vmem:[%s376 + $0x198] sm:$0xff]
        %v506 = vld [vmem:[%s376 + $0x1a0] sm:$0xff]
        %v507 = vld [vmem:[%s376 + $0x1a8] sm:$0xff]
        %v508 = vld [vmem:[%s376 + $0x1b0] sm:$0xff]
        %v509 = vld [vmem:[%s376 + $0x1b8] sm:$0xff]
        %v510 = vld [vmem:[%s376 + $0x1c0] sm:$0xff]
        %v511 = vld [vmem:[%s376 + $0x1c8] sm:$0xff]
        %v512 = vld [vmem:[%s376 + $0x1d0] sm:$0xff]
        %v513 = vld [vmem:[%s376 + $0x1d8] sm:$0xff]
        %v514 = vld [vmem:[%s376 + $0x1e0] sm:$0xff]
        %v515 = vld [vmem:[%s376 + $0x1e8] sm:$0xff]
        %v516 = vld [vmem:[%s376 + $0x1f0] sm:$0xff]
        %v517 = vld [vmem:[%s376 + $0x1f8] sm:$0xff]
        %v518 = vld [vmem:[#allocation7] sm:$0xff]
        %v519 = vld [vmem:[#allocation7 + $0x8] sm:$0xff]
        %v520 = vld [vmem:[#allocation7 + $0x10] sm:$0xff]
        %v521 = vld [vmem:[#allocation7 + $0x18] sm:$0xff]
        %v522 = vld [vmem:[#allocation7 + $0x20] sm:$0xff]
        %v523 = vld [vmem:[#allocation7 + $0x28] sm:$0xff]
        %v524 = vld [vmem:[#allocation7 + $0x30] sm:$0xff]
        %v525 = vld [vmem:[#allocation7 + $0x38] sm:$0xff]
        %v526 = vld [vmem:[#allocation7 + $0x40] sm:$0xff]
        %v527 = vld [vmem:[#allocation7 + $0x48] sm:$0xff]
        %v528 = vld [vmem:[#allocation7 + $0x50] sm:$0xff]
        %v529 = vld [vmem:[#allocation7 + $0x58] sm:$0xff]
        %v530 = vld [vmem:[#allocation7 + $0x60] sm:$0xff]
        %v531 = vld [vmem:[#allocation7 + $0x68] sm:$0xff]
        %v532 = vld [vmem:[#allocation7 + $0x70] sm:$0xff]
        %v533 = vld [vmem:[#allocation7 + $0x78] sm:$0xff]
        %v534 = vld [vmem:[#allocation8] sm:$0xff]
        %v535 = vld [vmem:[#allocation8 + $0x8] sm:$0xff]
        %v536 = vld [vmem:[#allocation8 + $0x10] sm:$0xff]
        %v537 = vld [vmem:[#allocation8 + $0x18] sm:$0xff]
        %v538 = vld [vmem:[#allocation8 + $0x20] sm:$0xff]
        %v539 = vld [vmem:[#allocation8 + $0x28] sm:$0xff]
        %v540 = vld [vmem:[#allocation8 + $0x30] sm:$0xff]
        %v541 = vld [vmem:[#allocation8 + $0x38] sm:$0xff]
        %v542 = vld [vmem:[#allocation8 + $0x40] sm:$0xff]
        %v543 = vld [vmem:[#allocation8 + $0x48] sm:$0xff]
        %v544 = vld [vmem:[#allocation8 + $0x50] sm:$0xff]
        %v545 = vld [vmem:[#allocation8 + $0x58] sm:$0xff]
        %v546 = vld [vmem:[#allocation8 + $0x60] sm:$0xff]
        %v547 = vld [vmem:[#allocation8 + $0x68] sm:$0xff]
        %v548 = vld [vmem:[#allocation8 + $0x70] sm:$0xff]
        %v549 = vld [vmem:[#allocation8 + $0x78] sm:$0xff]
        %v550 = vld [vmem:[#allocation10] sm:$0xff]
        %v551 = vld [vmem:[#allocation10 + $0x8] sm:$0xff]
        %v552 = vld [vmem:[#allocation10 + $0x10] sm:$0xff]
        %v553 = vld [vmem:[#allocation10 + $0x18] sm:$0xff]
        %v554 = vld [vmem:[#allocation10 + $0x20] sm:$0xff]
        %v555 = vld [vmem:[#allocation10 + $0x28] sm:$0xff]
        %v556 = vld [vmem:[#allocation10 + $0x30] sm:$0xff]
        %v557 = vld [vmem:[#allocation10 + $0x38] sm:$0xff]
        %v558 = vld [vmem:[#allocation10 + $0x40] sm:$0xff]
        %v559 = vld [vmem:[#allocation10 + $0x48] sm:$0xff]
        %v560 = vld [vmem:[#allocation10 + $0x50] sm:$0xff]
        %v561 = vld [vmem:[#allocation10 + $0x58] sm:$0xff]
        %v562 = vld [vmem:[#allocation10 + $0x60] sm:$0xff]
        %v563 = vld [vmem:[#allocation10 + $0x68] sm:$0xff]
        %v564 = vld [vmem:[#allocation10 + $0x70] sm:$0xff]
        %v565 = vld [vmem:[#allocation10 + $0x78] sm:$0xff]
        %566 = vmatprep.subr.mxu0 0.0
        %567 = vmatpush1.xpose.msra.mxu0 %v518
        %568 = vmatprep.subr.mxu0 0.0
        %569 = vmatpush1.xpose.msra.mxu0 %v519
        %570 = vmatprep.subr.mxu0 0.0
        %571 = vmatpush1.xpose.msra.mxu0 %v520
        %572 = vmatprep.subr.mxu0 0.0
        %573 = vmatpush1.xpose.msra.mxu0 %v521
        %574 = vmatprep.subr.mxu0 0.0
        %575 = vmatpush1.xpose.msra.mxu0 %v522
        %576 = vmatprep.subr.mxu0 0.0
        %577 = vmatpush1.xpose.msra.mxu0 %v523
        %578 = vmatprep.subr.mxu0 0.0
        %579 = vmatpush1.xpose.msra.mxu0 %v524
        %580 = vmatprep.subr.mxu0 0.0
        %581 = vmatpush1.xpose.msra.mxu0 %v525
        %582 = vmatprep.subr.mxu0 0.0
        %583 = vmatpush1.xpose.msra.mxu0 %v526
        %584 = vmatprep.subr.mxu0 0.0
        %585 = vmatpush1.xpose.msra.mxu0 %v527
        %586 = vmatprep.subr.mxu0 0.0
        %587 = vmatpush1.xpose.msra.mxu0 %v528
        %588 = vmatprep.subr.mxu0 0.0
        %589 = vmatpush1.xpose.msra.mxu0 %v529
        %590 = vmatprep.subr.mxu0 0.0
        %591 = vmatpush1.xpose.msra.mxu0 %v530
        %592 = vmatprep.subr.mxu0 0.0
        %593 = vmatpush1.xpose.msra.mxu0 %v531
        %594 = vmatprep.subr.mxu0 0.0
        %595 = vmatpush1.xpose.msra.mxu0 %v532
        %596 = vmatprep.subr.mxu0 0.0
        %597 = vmatpush1.xpose.msra.mxu0 %v533
        %598 = vmatprep.subr.mxu0 0.0
        %599 = vmatpush1.xpose.msra.mxu0 0.0
        %600 = vmatprep.subr.mxu0 0.0
        %601 = vmatpush1.xpose.msra.mxu0 0.0
        %602 = vmatprep.subr.mxu0 0.0
        %603 = vmatpush1.xpose.msra.mxu0 0.0
        %604 = vmatprep.subr.mxu0 0.0
        %605 = vmatpush1.xpose.msra.mxu0 0.0
        %606 = vmatprep.subr.mxu0 0.0
        %607 = vmatpush1.xpose.msra.mxu0 0.0
        %608 = vmatprep.subr.mxu0 0.0
        %609 = vmatpush1.xpose.msra.mxu0 0.0
        %610 = vmatprep.subr.mxu0 0.0
        %611 = vmatpush1.xpose.msra.mxu0 0.0
        %612 = vmatprep.subr.mxu0 0.0
        %613 = vmatpush1.xpose.msra.mxu0 0.0
        %614 = vmatprep.subr.mxu0 0.0
        %615 = vmatpush1.xpose.msra.mxu0 0.0
        %616 = vmatprep.subr.mxu0 0.0
        %617 = vmatpush1.xpose.msra.mxu0 0.0
        %618 = vmatprep.subr.mxu0 0.0
        %619 = vmatpush1.xpose.msra.mxu0 0.0
        %620 = vmatprep.subr.mxu0 0.0
        %621 = vmatpush1.xpose.msra.mxu0 0.0
        %622 = vmatprep.subr.mxu0 0.0
        %623 = vmatpush1.xpose.msra.mxu0 0.0
        %624 = vmatprep.subr.mxu0 0.0
        %625 = vmatpush1.xpose.msra.mxu0 0.0
        %626 = vmatprep.subr.mxu0 0.0
        %627 = vmatpush1.xpose.msra.mxu0 0.0
        %628 = vmatprep.subr.mxu0 0.0
        %629 = vmatpush1.xpose.msra.mxu0 0.0
        %630 = vmatprep.mubr.f32.mxu0 0.0
        %631 = vmatmul.mubr.f32.gmra.mrb[0].mxu0 %v450
        %v632 = vpop.f32.mrb[0].mxu0
        %v633 = vadd.f32 0.0, %v632
        %v634 = vpop.f32.mrb[0].mxu0
        %635 = vmatprep.mubr.f32.mxu0 0.0
        %636 = vmatmul.mubr.f32.gmra.mrb[0].mxu0 %v451
        %v637 = vpop.f32.mrb[0].mxu0
        %v638 = vadd.f32 0.0, %v637
        %v639 = vpop.f32.mrb[0].mxu0
        %640 = vmatprep.mubr.f32.mxu0 0.0
        %641 = vmatmul.mubr.f32.gmra.mrb[0].mxu0 %v452
        %v642 = vpop.f32.mrb[0].mxu0
        %v643 = vadd.f32 0.0, %v642
        %v644 = vpop.f32.mrb[0].mxu0
        %645 = vmatprep.mubr.f32.mxu0 0.0
        %646 = vmatmul.mubr.f32.gmra.mrb[0].mxu0 %v453
        %v647 = vpop.f32.mrb[0].mxu0
        %v648 = vadd.f32 0.0, %v647
        %v649 = vpop.f32.mrb[0].mxu0
        %650 = vdwg.mxu0
        %651 = vmatprep.subr.mxu0 0.0
        %652 = vmatpush1.xpose.msra.mxu0 %v454
        %653 = vmatprep.subr.mxu0 0.0
        %654 = vmatpush1.xpose.msra.mxu0 %v455
        %655 = vmatprep.subr.mxu0 0.0
        %656 = vmatpush1.xpose.msra.mxu0 %v456
        %657 = vmatprep.subr.mxu0 0.0
        %658 = vmatpush1.xpose.msra.mxu0 %v457
        %659 = vmatprep.subr.mxu0 0.0
        %660 = vmatpush1.xpose.msra.mxu0 %v458
        %661 = vmatprep.subr.mxu0 0.0
        %662 = vmatpush1.xpose.msra.mxu0 %v459
        %663 = vmatprep.subr.mxu0 0.0
        %664 = vmatpush1.xpose.msra.mxu0 %v460
        %665 = vmatprep.subr.mxu0 0.0
        %666 = vmatpush1.xpose.msra.mxu0 %v461
        %667 = vmatprep.subr.mxu0 0.0
        %668 = vmatpush1.xpose.msra.mxu0 %v462
        %669 = vmatprep.subr.mxu0 0.0
        %670 = vmatpush1.xpose.msra.mxu0 %v463
        %671 = vmatprep.subr.mxu0 0.0
        %672 = vmatpush1.xpose.msra.mxu0 %v464
        %673 = vmatprep.subr.mxu0 0.0
        %674 = vmatpush1.xpose.msra.mxu0 %v465
        %675 = vmatprep.subr.mxu0 0.0
        %676 = vmatpush1.xpose.msra.mxu0 %v466
        %677 = vmatprep.subr.mxu0 0.0
        %678 = vmatpush1.xpose.msra.mxu0 %v467
        %679 = vmatprep.subr.mxu0 0.0
        %680 = vmatpush1.xpose.msra.mxu0 %v468
        %681 = vmatprep.subr.mxu0 0.0
        %682 = vmatpush1.xpose.msra.mxu0 %v469
        %683 = vmatprep.subr.mxu0 0.0
        %684 = vmatpush1.xpose.msra.mxu0 0.0
        %685 = vmatprep.subr.mxu0 0.0
        %686 = vmatpush1.xpose.msra.mxu0 0.0
        %687 = vmatprep.subr.mxu0 0.0
        %688 = vmatpush1.xpose.msra.mxu0 0.0
        %689 = vmatprep.subr.mxu0 0.0
        %690 = vmatpush1.xpose.msra.mxu0 0.0
        %691 = vmatprep.subr.mxu0 0.0
        %692 = vmatpush1.xpose.msra.mxu0 0.0
        %693 = vmatprep.subr.mxu0 0.0
        %694 = vmatpush1.xpose.msra.mxu0 0.0
        %695 = vmatprep.subr.mxu0 0.0
        %696 = vmatpush1.xpose.msra.mxu0 0.0
        %697 = vmatprep.subr.mxu0 0.0
        %698 = vmatpush1.xpose.msra.mxu0 0.0
        %699 = vmatprep.subr.mxu0 0.0
        %700 = vmatpush1.xpose.msra.mxu0 0.0
        %701 = vmatprep.subr.mxu0 0.0
        %702 = vmatpush1.xpose.msra.mxu0 0.0
        %703 = vmatprep.subr.mxu0 0.0
        %704 = vmatpush1.xpose.msra.mxu0 0.0
        %705 = vmatprep.subr.mxu0 0.0
        %706 = vmatpush1.xpose.msra.mxu0 0.0
        %707 = vmatprep.subr.mxu0 0.0
        %708 = vmatpush1.xpose.msra.mxu0 0.0
        %709 = vmatprep.subr.mxu0 0.0
        %710 = vmatpush1.xpose.msra.mxu0 0.0
        %711 = vmatprep.subr.mxu0 0.0
        %712 = vmatpush1.xpose.msra.mxu0 0.0
        %713 = vmatprep.subr.mxu0 0.0
        %714 = vmatpush1.xpose.msra.mxu0 0.0
        %715 = vmatprep.mubr.f32.mxu0 0.0
        %716 = vmatmul.mubr.f32.gmra.mrb[0].mxu0 %v633
        %v717 = vpop.f32.mrb[0].mxu0
        %v718 = vadd.f32 0.0, %v717
        %v719 = vpop.f32.mrb[0].mxu0
        %720 = vdwg.mxu0
        %721 = vmatprep.subr.mxu0 0.0
        %722 = vmatpush1.xpose.msra.mxu0 %v470
        %723 = vmatprep.subr.mxu0 0.0
        %724 = vmatpush1.xpose.msra.mxu0 %v471
        %725 = vmatprep.subr.mxu0 0.0
        %726 = vmatpush1.xpose.msra.mxu0 %v472
        %727 = vmatprep.subr.mxu0 0.0
        %728 = vmatpush1.xpose.msra.mxu0 %v473
        %729 = vmatprep.subr.mxu0 0.0
        %730 = vmatpush1.xpose.msra.mxu0 %v474
        %731 = vmatprep.subr.mxu0 0.0
        %732 = vmatpush1.xpose.msra.mxu0 %v475
        %733 = vmatprep.subr.mxu0 0.0
        %734 = vmatpush1.xpose.msra.mxu0 %v476
        %735 = vmatprep.subr.mxu0 0.0
        %736 = vmatpush1.xpose.msra.mxu0 %v477
        %737 = vmatprep.subr.mxu0 0.0
        %738 = vmatpush1.xpose.msra.mxu0 %v478
        %739 = vmatprep.subr.mxu0 0.0
        %740 = vmatpush1.xpose.msra.mxu0 %v479
        %741 = vmatprep.subr.mxu0 0.0
        %742 = vmatpush1.xpose.msra.mxu0 %v480
        %743 = vmatprep.subr.mxu0 0.0
        %744 = vmatpush1.xpose.msra.mxu0 %v481
        %745 = vmatprep.subr.mxu0 0.0
        %746 = vmatpush1.xpose.msra.mxu0 %v482
        %747 = vmatprep.subr.mxu0 0.0
        %748 = vmatpush1.xpose.msra.mxu0 %v483
        %749 = vmatprep.subr.mxu0 0.0
        %750 = vmatpush1.xpose.msra.mxu0 %v484
        %751 = vmatprep.subr.mxu0 0.0
        %752 = vmatpush1.xpose.msra.mxu0 %v485
        %753 = vmatprep.subr.mxu0 0.0
        %754 = vmatpush1.xpose.msra.mxu0 0.0
        %755 = vmatprep.subr.mxu0 0.0
        %756 = vmatpush1.xpose.msra.mxu0 0.0
        %757 = vmatprep.subr.mxu0 0.0
        %758 = vmatpush1.xpose.msra.mxu0 0.0
        %759 = vmatprep.subr.mxu0 0.0
        %760 = vmatpush1.xpose.msra.mxu0 0.0
        %761 = vmatprep.subr.mxu0 0.0
        %762 = vmatpush1.xpose.msra.mxu0 0.0
        %763 = vmatprep.subr.mxu0 0.0
        %764 = vmatpush1.xpose.msra.mxu0 0.0
        %765 = vmatprep.subr.mxu0 0.0
        %766 = vmatpush1.xpose.msra.mxu0 0.0
        %767 = vmatprep.subr.mxu0 0.0
        %768 = vmatpush1.xpose.msra.mxu0 0.0
        %769 = vmatprep.subr.mxu0 0.0
        %770 = vmatpush1.xpose.msra.mxu0 0.0
        %771 = vmatprep.subr.mxu0 0.0
        %772 = vmatpush1.xpose.msra.mxu0 0.0
        %773 = vmatprep.subr.mxu0 0.0
        %774 = vmatpush1.xpose.msra.mxu0 0.0
        %775 = vmatprep.subr.mxu0 0.0
        %776 = vmatpush1.xpose.msra.mxu0 0.0
        %777 = vmatprep.subr.mxu0 0.0
        %778 = vmatpush1.xpose.msra.mxu0 0.0
        %779 = vmatprep.subr.mxu0 0.0
        %780 = vmatpush1.xpose.msra.mxu0 0.0
        %781 = vmatprep.subr.mxu0 0.0
        %782 = vmatpush1.xpose.msra.mxu0 0.0
        %783 = vmatprep.subr.mxu0 0.0
        %784 = vmatpush1.xpose.msra.mxu0 0.0
        %785 = vmatprep.mubr.f32.mxu0 0.0
        %786 = vmatmul.mubr.f32.gmra.mrb[0].mxu0 %v638
        %v787 = vpop.f32.mrb[0].mxu0
        %v788 = vadd.f32 0.0, %v787
        %v789 = vpop.f32.mrb[0].mxu0
        %790 = vdwg.mxu0
        %791 = vmatprep.subr.mxu0 0.0
        %792 = vmatpush1.xpose.msra.mxu0 %v486
        %793 = vmatprep.subr.mxu0 0.0
        %794 = vmatpush1.xpose.msra.mxu0 %v487
        %795 = vmatprep.subr.mxu0 0.0
        %796 = vmatpush1.xpose.msra.mxu0 %v488
        %797 = vmatprep.subr.mxu0 0.0
        %798 = vmatpush1.xpose.msra.mxu0 %v489
        %799 = vmatprep.subr.mxu0 0.0
        %800 = vmatpush1.xpose.msra.mxu0 %v490
        %801 = vmatprep.subr.mxu0 0.0
        %802 = vmatpush1.xpose.msra.mxu0 %v491
        %803 = vmatprep.subr.mxu0 0.0
        %804 = vmatpush1.xpose.msra.mxu0 %v492
        %805 = vmatprep.subr.mxu0 0.0
        %806 = vmatpush1.xpose.msra.mxu0 %v493
        %807 = vmatprep.subr.mxu0 0.0
        %808 = vmatpush1.xpose.msra.mxu0 %v494
        %809 = vmatprep.subr.mxu0 0.0
        %810 = vmatpush1.xpose.msra.mxu0 %v495
        %811 = vmatprep.subr.mxu0 0.0
        %812 = vmatpush1.xpose.msra.mxu0 %v496
        %813 = vmatprep.subr.mxu0 0.0
        %814 = vmatpush1.xpose.msra.mxu0 %v497
        %815 = vmatprep.subr.mxu0 0.0
        %816 = vmatpush1.xpose.msra.mxu0 %v498
        %817 = vmatprep.subr.mxu0 0.0
        %818 = vmatpush1.xpose.msra.mxu0 %v499
        %819 = vmatprep.subr.mxu0 0.0
        %820 = vmatpush1.xpose.msra.mxu0 %v500
        %821 = vmatprep.subr.mxu0 0.0
        %822 = vmatpush1.xpose.msra.mxu0 %v501
        %823 = vmatprep.subr.mxu0 0.0
        %824 = vmatpush1.xpose.msra.mxu0 0.0
        %825 = vmatprep.subr.mxu0 0.0
        %826 = vmatpush1.xpose.msra.mxu0 0.0
        %827 = vmatprep.subr.mxu0 0.0
        %828 = vmatpush1.xpose.msra.mxu0 0.0
        %829 = vmatprep.subr.mxu0 0.0
        %830 = vmatpush1.xpose.msra.mxu0 0.0
        %831 = vmatprep.subr.mxu0 0.0
        %832 = vmatpush1.xpose.msra.mxu0 0.0
        %833 = vmatprep.subr.mxu0 0.0
        %834 = vmatpush1.xpose.msra.mxu0 0.0
        %835 = vmatprep.subr.mxu0 0.0
        %836 = vmatpush1.xpose.msra.mxu0 0.0
        %837 = vmatprep.subr.mxu0 0.0
        %838 = vmatpush1.xpose.msra.mxu0 0.0
        %839 = vmatprep.subr.mxu0 0.0
        %840 = vmatpush1.xpose.msra.mxu0 0.0
        %841 = vmatprep.subr.mxu0 0.0
        %842 = vmatpush1.xpose.msra.mxu0 0.0
        %843 = vmatprep.subr.mxu0 0.0
        %844 = vmatpush1.xpose.msra.mxu0 0.0
        %845 = vmatprep.subr.mxu0 0.0
        %846 = vmatpush1.xpose.msra.mxu0 0.0
        %847 = vmatprep.subr.mxu0 0.0
        %848 = vmatpush1.xpose.msra.mxu0 0.0
        %849 = vmatprep.subr.mxu0 0.0
        %850 = vmatpush1.xpose.msra.mxu0 0.0
        %851 = vmatprep.subr.mxu0 0.0
        %852 = vmatpush1.xpose.msra.mxu0 0.0
        %853 = vmatprep.subr.mxu0 0.0
        %854 = vmatpush1.xpose.msra.mxu0 0.0
        %855 = vmatprep.mubr.f32.mxu0 0.0
        %856 = vmatmul.mubr.f32.gmra.mrb[0].mxu0 %v643
        %v857 = vpop.f32.mrb[0].mxu0
        %v858 = vadd.f32 0.0, %v857
        %v859 = vpop.f32.mrb[0].mxu0
        %860 = vdwg.mxu0
        %861 = vmatprep.subr.mxu0 0.0
        %862 = vmatpush1.xpose.msra.mxu0 %v502
        %863 = vmatprep.subr.mxu0 0.0
        %864 = vmatpush1.xpose.msra.mxu0 %v503
        %865 = vmatprep.subr.mxu0 0.0
        %866 = vmatpush1.xpose.msra.mxu0 %v504
        %867 = vmatprep.subr.mxu0 0.0
        %868 = vmatpush1.xpose.msra.mxu0 %v505
        %869 = vmatprep.subr.mxu0 0.0
        %870 = vmatpush1.xpose.msra.mxu0 %v506
        %871 = vmatprep.subr.mxu0 0.0
        %872 = vmatpush1.xpose.msra.mxu0 %v507
        %873 = vmatprep.subr.mxu0 0.0
        %874 = vmatpush1.xpose.msra.mxu0 %v508
        %875 = vmatprep.subr.mxu0 0.0
        %876 = vmatpush1.xpose.msra.mxu0 %v509
        %877 = vmatprep.subr.mxu0 0.0
        %878 = vmatpush1.xpose.msra.mxu0 %v510
        %879 = vmatprep.subr.mxu0 0.0
        %880 = vmatpush1.xpose.msra.mxu0 %v511
        %881 = vmatprep.subr.mxu0 0.0
        %882 = vmatpush1.xpose.msra.mxu0 %v512
        %883 = vmatprep.subr.mxu0 0.0
        %884 = vmatpush1.xpose.msra.mxu0 %v513
        %885 = vmatprep.subr.mxu0 0.0
        %886 = vmatpush1.xpose.msra.mxu0 %v514
        %887 = vmatprep.subr.mxu0 0.0
        %888 = vmatpush1.xpose.msra.mxu0 %v515
        %889 = vmatprep.subr.mxu0 0.0
        %890 = vmatpush1.xpose.msra.mxu0 %v516
        %891 = vmatprep.subr.mxu0 0.0
        %892 = vmatpush1.xpose.msra.mxu0 %v517
        %893 = vmatprep.subr.mxu0 0.0
        %894 = vmatpush1.xpose.msra.mxu0 0.0
        %895 = vmatprep.subr.mxu0 0.0
        %896 = vmatpush1.xpose.msra.mxu0 0.0
        %897 = vmatprep.subr.mxu0 0.0
        %898 = vmatpush1.xpose.msra.mxu0 0.0
        %899 = vmatprep.subr.mxu0 0.0
        %900 = vmatpush1.xpose.msra.mxu0 0.0
        %901 = vmatprep.subr.mxu0 0.0
        %902 = vmatpush1.xpose.msra.mxu0 0.0
        %903 = vmatprep.subr.mxu0 0.0
        %904 = vmatpush1.xpose.msra.mxu0 0.0
        %905 = vmatprep.subr.mxu0 0.0
        %906 = vmatpush1.xpose.msra.mxu0 0.0
        %907 = vmatprep.subr.mxu0 0.0
        %908 = vmatpush1.xpose.msra.mxu0 0.0
        %909 = vmatprep.subr.mxu0 0.0
        %910 = vmatpush1.xpose.msra.mxu0 0.0
        %911 = vmatprep.subr.mxu0 0.0
        %912 = vmatpush1.xpose.msra.mxu0 0.0
        %913 = vmatprep.subr.mxu0 0.0
        %914 = vmatpush1.xpose.msra.mxu0 0.0
        %915 = vmatprep.subr.mxu0 0.0
        %916 = vmatpush1.xpose.msra.mxu0 0.0
        %917 = vmatprep.subr.mxu0 0.0
        %918 = vmatpush1.xpose.msra.mxu0 0.0
        %919 = vmatprep.subr.mxu0 0.0
        %920 = vmatpush1.xpose.msra.mxu0 0.0
        %921 = vmatprep.subr.mxu0 0.0
        %922 = vmatpush1.xpose.msra.mxu0 0.0
        %923 = vmatprep.subr.mxu0 0.0
        %924 = vmatpush1.xpose.msra.mxu0 0.0
        %925 = vmatprep.mubr.f32.mxu0 0.0
        %926 = vmatmul.mubr.f32.gmra.mrb[0].mxu0 %v648
        %v927 = vpop.f32.mrb[0].mxu0
        %v928 = vadd.f32 0.0, %v927
        %v929 = vpop.f32.mrb[0].mxu0
        %930 = vdwg.mxu0
        %v931 = vlaneseq
        %v932 = vand.u32 %v931, 127
        %v933 = vld [vmem:[%s443] sm:$0x1]
        %v934 = vld [vmem:[%s443 + $0x1] sm:$0x1]
        %v935 = vld [vmem:[%s443 + $0x2] sm:$0x1]
        %v936 = vld [vmem:[%s443 + $0x3] sm:$0x1]
        %v937 = vlaneseq
        %v938 = vshrl.u32 %v937, 7
        %v939 = vsub.s32 0, %v938
        %v940 = vrot.slane %v933, %v939
        %v941 = vlaneseq
        %v942 = vshrl.u32 %v941, 7
        %v943 = vsub.s32 0, %v942
        %v944 = vrot.slane %v934, %v943
        %v945 = vlaneseq
        %v946 = vshrl.u32 %v945, 7
        %v947 = vsub.s32 0, %v946
        %v948 = vrot.slane %v935, %v947
        %v949 = vlaneseq
        %v950 = vshrl.u32 %v949, 7
        %v951 = vsub.s32 0, %v950
        %v952 = vrot.slane %v936, %v951
        %953 = vset.pattern.permute.xlu0 0
        %954 = vperm.xlu0 %953, %v940
        %v955 = vpop.permute.xlu0 %954
        %956 = vset.pattern.permute.xlu0 0
        %957 = vperm.xlu0 %956, %v944
        %v958 = vpop.permute.xlu0 %957
        %959 = vset.pattern.permute.xlu0 0
        %960 = vperm.xlu0 %959, %v948
        %v961 = vpop.permute.xlu0 %960
        %962 = vset.pattern.permute.xlu0 0
        %963 = vperm.xlu0 %962, %v952
        %v964 = vpop.permute.xlu0 %963
        %vm965 = vcmp.lt.s32.totalorder %v932, %v955
        %vm966 = vcmp.lt.s32.totalorder %v932, %v958
        %vm967 = vcmp.lt.s32.totalorder %v932, %v961
        %vm968 = vcmp.lt.s32.totalorder %v932, %v964
        %v969 = vsel %vm965, %v718, -inf
        %v970 = vsel %vm966, %v788, -inf
        %v971 = vsel %vm967, %v858, -inf
        %v972 = vsel %vm968, %v928, -inf
        %973 = vmax.xlane.f32.xlu0 %v969
        %v974 = vpop.xlane.xlu0 %973
        %975 = vmax.xlane.f32.xlu0 %v970
        %v976 = vpop.xlane.xlu0 %975
        %977 = vmax.xlane.f32.xlu0 %v971
        %v978 = vpop.xlane.xlu0 %977
        %979 = vmax.xlane.f32.xlu0 %v972
        %v980 = vpop.xlane.xlu0 %979
        %v981 = vsub.f32 %v969, %v974
        %v982 = vsub.f32 %v970, %v976
        %v983 = vsub.f32 %v971, %v978
        %v984 = vsub.f32 %v972, %v980
        %v985 = vmul.f32 %v981, 1.442695
        %v986 = vpow.pop %v985
        %v987 = vmul.f32 %v982, 1.442695
        %v988 = vpow.pop %v987
        %v989 = vmul.f32 %v983, 1.442695
        %v990 = vpow.pop %v989
        %v991 = vmul.f32 %v984, 1.442695
        %v992 = vpow.pop %v991
        %993 = vadd.xlane.f32.xlu0 %v986
        %v994 = vpop.xlane.xlu0 %993
        %995 = vadd.xlane.f32.xlu0 %v988
        %v996 = vpop.xlane.xlu0 %995
        %997 = vadd.xlane.f32.xlu0 %v990
        %v998 = vpop.xlane.xlu0 %997
        %999 = vadd.xlane.f32.xlu0 %v992
        %v1000 = vpop.xlane.xlu0 %999
        %v1001 = vrcp.pop %v994
        %v1002 = vmul.f32 1.0, %v1001
        %v1003 = vrcp.pop %v996
        %v1004 = vmul.f32 1.0, %v1003
        %v1005 = vrcp.pop %v998
        %v1006 = vmul.f32 1.0, %v1005
        %v1007 = vrcp.pop %v1000
        %v1008 = vmul.f32 1.0, %v1007
        %v1009 = vmul.f32 %v986, %v1002
        %v1010 = vmul.f32 %v988, %v1004
        %v1011 = vmul.f32 %v990, %v1006
        %v1012 = vmul.f32 %v992, %v1008
        %1013 = vmatprep.subr.mxu0 0.0
        %1014 = vmatpush1.msra.mxu0 %v454
        %1015 = vmatprep.subr.mxu0 0.0
        %1016 = vmatpush1.msra.mxu0 %v455
        %1017 = vmatprep.subr.mxu0 0.0
        %1018 = vmatpush1.msra.mxu0 %v456
        %1019 = vmatprep.subr.mxu0 0.0
        %1020 = vmatpush1.msra.mxu0 %v457
        %1021 = vmatprep.subr.mxu0 0.0
        %1022 = vmatpush1.msra.mxu0 %v458
        %1023 = vmatprep.subr.mxu0 0.0
        %1024 = vmatpush1.msra.mxu0 %v459
        %1025 = vmatprep.subr.mxu0 0.0
        %1026 = vmatpush1.msra.mxu0 %v460
        %1027 = vmatprep.subr.mxu0 0.0
        %1028 = vmatpush1.msra.mxu0 %v461
        %1029 = vmatprep.subr.mxu0 0.0
        %1030 = vmatpush1.msra.mxu0 %v462
        %1031 = vmatprep.subr.mxu0 0.0
        %1032 = vmatpush1.msra.mxu0 %v463
        %1033 = vmatprep.subr.mxu0 0.0
        %1034 = vmatpush1.msra.mxu0 %v464
        %1035 = vmatprep.subr.mxu0 0.0
        %1036 = vmatpush1.msra.mxu0 %v465
        %1037 = vmatprep.subr.mxu0 0.0
        %1038 = vmatpush1.msra.mxu0 %v466
        %1039 = vmatprep.subr.mxu0 0.0
        %1040 = vmatpush1.msra.mxu0 %v467
        %1041 = vmatprep.subr.mxu0 0.0
        %1042 = vmatpush1.msra.mxu0 %v468
        %1043 = vmatprep.subr.mxu0 0.0
        %1044 = vmatpush1.msra.mxu0 %v469
        %1045 = vmatprep.subr.mxu0 0.0
        %1046 = vmatpush1.msra.mxu0 0.0
        %1047 = vmatprep.subr.mxu0 0.0
        %1048 = vmatpush1.msra.mxu0 0.0
        %1049 = vmatprep.subr.mxu0 0.0
        %1050 = vmatpush1.msra.mxu0 0.0
        %1051 = vmatprep.subr.mxu0 0.0
        %1052 = vmatpush1.msra.mxu0 0.0
        %1053 = vmatprep.subr.mxu0 0.0
        %1054 = vmatpush1.msra.mxu0 0.0
        %1055 = vmatprep.subr.mxu0 0.0
        %1056 = vmatpush1.msra.mxu0 0.0
        %1057 = vmatprep.subr.mxu0 0.0
        %1058 = vmatpush1.msra.mxu0 0.0
        %1059 = vmatprep.subr.mxu0 0.0
        %1060 = vmatpush1.msra.mxu0 0.0
        %1061 = vmatprep.subr.mxu0 0.0
        %1062 = vmatpush1.msra.mxu0 0.0
        %1063 = vmatprep.subr.mxu0 0.0
        %1064 = vmatpush1.msra.mxu0 0.0
        %1065 = vmatprep.subr.mxu0 0.0
        %1066 = vmatpush1.msra.mxu0 0.0
        %1067 = vmatprep.subr.mxu0 0.0
        %1068 = vmatpush1.msra.mxu0 0.0
        %1069 = vmatprep.subr.mxu0 0.0
        %1070 = vmatpush1.msra.mxu0 0.0
        %1071 = vmatprep.subr.mxu0 0.0
        %1072 = vmatpush1.msra.mxu0 0.0
        %1073 = vmatprep.subr.mxu0 0.0
        %1074 = vmatpush1.msra.mxu0 0.0
        %1075 = vmatprep.subr.mxu0 0.0
        %1076 = vmatpush1.msra.mxu0 0.0
        %1077 = vmatprep.mubr.f32.mxu0 0.0
        %1078 = vmatmul.mubr.f32.gmra.mrb[0].mxu0 %v1009
        %v1079 = vpop.f32.mrb[0].mxu0
        %v1080 = vadd.f32 0.0, %v1079
        %v1081 = vpop.f32.mrb[0].mxu0
        %1082 = vdwg.mxu0
        %1083 = vmatprep.subr.mxu0 0.0
        %1084 = vmatpush1.msra.mxu0 %v470
        %1085 = vmatprep.subr.mxu0 0.0
        %1086 = vmatpush1.msra.mxu0 %v471
        %1087 = vmatprep.subr.mxu0 0.0
        %1088 = vmatpush1.msra.mxu0 %v472
        %1089 = vmatprep.subr.mxu0 0.0
        %1090 = vmatpush1.msra.mxu0 %v473
        %1091 = vmatprep.subr.mxu0 0.0
        %1092 = vmatpush1.msra.mxu0 %v474
        %1093 = vmatprep.subr.mxu0 0.0
        %1094 = vmatpush1.msra.mxu0 %v475
        %1095 = vmatprep.subr.mxu0 0.0
        %1096 = vmatpush1.msra.mxu0 %v476
        %1097 = vmatprep.subr.mxu0 0.0
        %1098 = vmatpush1.msra.mxu0 %v477
        %1099 = vmatprep.subr.mxu0 0.0
        %1100 = vmatpush1.msra.mxu0 %v478
        %1101 = vmatprep.subr.mxu0 0.0
        %1102 = vmatpush1.msra.mxu0 %v479
        %1103 = vmatprep.subr.mxu0 0.0
        %1104 = vmatpush1.msra.mxu0 %v480
        %1105 = vmatprep.subr.mxu0 0.0
        %1106 = vmatpush1.msra.mxu0 %v481
        %1107 = vmatprep.subr.mxu0 0.0
        %1108 = vmatpush1.msra.mxu0 %v482
        %1109 = vmatprep.subr.mxu0 0.0
        %1110 = vmatpush1.msra.mxu0 %v483
        %1111 = vmatprep.subr.mxu0 0.0
        %1112 = vmatpush1.msra.mxu0 %v484
        %1113 = vmatprep.subr.mxu0 0.0
        %1114 = vmatpush1.msra.mxu0 %v485
        %1115 = vmatprep.subr.mxu0 0.0
        %1116 = vmatpush1.msra.mxu0 0.0
        %1117 = vmatprep.subr.mxu0 0.0
        %1118 = vmatpush1.msra.mxu0 0.0
        %1119 = vmatprep.subr.mxu0 0.0
        %1120 = vmatpush1.msra.mxu0 0.0
        %1121 = vmatprep.subr.mxu0 0.0
        %1122 = vmatpush1.msra.mxu0 0.0
        %1123 = vmatprep.subr.mxu0 0.0
        %1124 = vmatpush1.msra.mxu0 0.0
        %1125 = vmatprep.subr.mxu0 0.0
        %1126 = vmatpush1.msra.mxu0 0.0
        %1127 = vmatprep.subr.mxu0 0.0
        %1128 = vmatpush1.msra.mxu0 0.0
        %1129 = vmatprep.subr.mxu0 0.0
        %1130 = vmatpush1.msra.mxu0 0.0
        %1131 = vmatprep.subr.mxu0 0.0
        %1132 = vmatpush1.msra.mxu0 0.0
        %1133 = vmatprep.subr.mxu0 0.0
        %1134 = vmatpush1.msra.mxu0 0.0
        %1135 = vmatprep.subr.mxu0 0.0
        %1136 = vmatpush1.msra.mxu0 0.0
        %1137 = vmatprep.subr.mxu0 0.0
        %1138 = vmatpush1.msra.mxu0 0.0
        %1139 = vmatprep.subr.mxu0 0.0
        %1140 = vmatpush1.msra.mxu0 0.0
        %1141 = vmatprep.subr.mxu0 0.0
        %1142 = vmatpush1.msra.mxu0 0.0
        %1143 = vmatprep.subr.mxu0 0.0
        %1144 = vmatpush1.msra.mxu0 0.0
        %1145 = vmatprep.subr.mxu0 0.0
        %1146 = vmatpush1.msra.mxu0 0.0
        %1147 = vmatprep.mubr.f32.mxu0 0.0
        %1148 = vmatmul.mubr.f32.gmra.mrb[0].mxu0 %v1010
        %v1149 = vpop.f32.mrb[0].mxu0
        %v1150 = vadd.f32 0.0, %v1149
        %v1151 = vpop.f32.mrb[0].mxu0
        %1152 = vdwg.mxu0
        %1153 = vmatprep.subr.mxu0 0.0
        %1154 = vmatpush1.msra.mxu0 %v486
        %1155 = vmatprep.subr.mxu0 0.0
        %1156 = vmatpush1.msra.mxu0 %v487
        %1157 = vmatprep.subr.mxu0 0.0
        %1158 = vmatpush1.msra.mxu0 %v488
        %1159 = vmatprep.subr.mxu0 0.0
        %1160 = vmatpush1.msra.mxu0 %v489
        %1161 = vmatprep.subr.mxu0 0.0
        %1162 = vmatpush1.msra.mxu0 %v490
        %1163 = vmatprep.subr.mxu0 0.0
        %1164 = vmatpush1.msra.mxu0 %v491
        %1165 = vmatprep.subr.mxu0 0.0
        %1166 = vmatpush1.msra.mxu0 %v492
        %1167 = vmatprep.subr.mxu0 0.0
        %1168 = vmatpush1.msra.mxu0 %v493
        %1169 = vmatprep.subr.mxu0 0.0
        %1170 = vmatpush1.msra.mxu0 %v494
        %1171 = vmatprep.subr.mxu0 0.0
        %1172 = vmatpush1.msra.mxu0 %v495
        %1173 = vmatprep.subr.mxu0 0.0
        %1174 = vmatpush1.msra.mxu0 %v496
        %1175 = vmatprep.subr.mxu0 0.0
        %1176 = vmatpush1.msra.mxu0 %v497
        %1177 = vmatprep.subr.mxu0 0.0
        %1178 = vmatpush1.msra.mxu0 %v498
        %1179 = vmatprep.subr.mxu0 0.0
        %1180 = vmatpush1.msra.mxu0 %v499
        %1181 = vmatprep.subr.mxu0 0.0
        %1182 = vmatpush1.msra.mxu0 %v500
        %1183 = vmatprep.subr.mxu0 0.0
        %1184 = vmatpush1.msra.mxu0 %v501
        %1185 = vmatprep.subr.mxu0 0.0
        %1186 = vmatpush1.msra.mxu0 0.0
        %1187 = vmatprep.subr.mxu0 0.0
        %1188 = vmatpush1.msra.mxu0 0.0
        %1189 = vmatprep.subr.mxu0 0.0
        %1190 = vmatpush1.msra.mxu0 0.0
        %1191 = vmatprep.subr.mxu0 0.0
        %1192 = vmatpush1.msra.mxu0 0.0
        %1193 = vmatprep.subr.mxu0 0.0
        %1194 = vmatpush1.msra.mxu0 0.0
        %1195 = vmatprep.subr.mxu0 0.0
        %1196 = vmatpush1.msra.mxu0 0.0
        %1197 = vmatprep.subr.mxu0 0.0
        %1198 = vmatpush1.msra.mxu0 0.0
        %1199 = vmatprep.subr.mxu0 0.0
        %1200 = vmatpush1.msra.mxu0 0.0
        %1201 = vmatprep.subr.mxu0 0.0
        %1202 = vmatpush1.msra.mxu0 0.0
        %1203 = vmatprep.subr.mxu0 0.0
        %1204 = vmatpush1.msra.mxu0 0.0
        %1205 = vmatprep.subr.mxu0 0.0
        %1206 = vmatpush1.msra.mxu0 0.0
        %1207 = vmatprep.subr.mxu0 0.0
        %1208 = vmatpush1.msra.mxu0 0.0
        %1209 = vmatprep.subr.mxu0 0.0
        %1210 = vmatpush1.msra.mxu0 0.0
        %1211 = vmatprep.subr.mxu0 0.0
        %1212 = vmatpush1.msra.mxu0 0.0
        %1213 = vmatprep.subr.mxu0 0.0
        %1214 = vmatpush1.msra.mxu0 0.0
        %1215 = vmatprep.subr.mxu0 0.0
        %1216 = vmatpush1.msra.mxu0 0.0
        %1217 = vmatprep.mubr.f32.mxu0 0.0
        %1218 = vmatmul.mubr.f32.gmra.mrb[0].mxu0 %v1011
        %v1219 = vpop.f32.mrb[0].mxu0
        %v1220 = vadd.f32 0.0, %v1219
        %v1221 = vpop.f32.mrb[0].mxu0
        %1222 = vdwg.mxu0
        %1223 = vmatprep.subr.mxu0 0.0
        %1224 = vmatpush1.msra.mxu0 %v502
        %1225 = vmatprep.subr.mxu0 0.0
        %1226 = vmatpush1.msra.mxu0 %v503
        %1227 = vmatprep.subr.mxu0 0.0
        %1228 = vmatpush1.msra.mxu0 %v504
        %1229 = vmatprep.subr.mxu0 0.0
        %1230 = vmatpush1.msra.mxu0 %v505
        %1231 = vmatprep.subr.mxu0 0.0
        %1232 = vmatpush1.msra.mxu0 %v506
        %1233 = vmatprep.subr.mxu0 0.0
        %1234 = vmatpush1.msra.mxu0 %v507
        %1235 = vmatprep.subr.mxu0 0.0
        %1236 = vmatpush1.msra.mxu0 %v508
        %1237 = vmatprep.subr.mxu0 0.0
        %1238 = vmatpush1.msra.mxu0 %v509
        %1239 = vmatprep.subr.mxu0 0.0
        %1240 = vmatpush1.msra.mxu0 %v510
        %1241 = vmatprep.subr.mxu0 0.0
        %1242 = vmatpush1.msra.mxu0 %v511
        %1243 = vmatprep.subr.mxu0 0.0
        %1244 = vmatpush1.msra.mxu0 %v512
        %1245 = vmatprep.subr.mxu0 0.0
        %1246 = vmatpush1.msra.mxu0 %v513
        %1247 = vmatprep.subr.mxu0 0.0
        %1248 = vmatpush1.msra.mxu0 %v514
        %1249 = vmatprep.subr.mxu0 0.0
        %1250 = vmatpush1.msra.mxu0 %v515
        %1251 = vmatprep.subr.mxu0 0.0
        %1252 = vmatpush1.msra.mxu0 %v516
        %1253 = vmatprep.subr.mxu0 0.0
        %1254 = vmatpush1.msra.mxu0 %v517
        %1255 = vmatprep.subr.mxu0 0.0
        %1256 = vmatpush1.msra.mxu0 0.0
        %1257 = vmatprep.subr.mxu0 0.0
        %1258 = vmatpush1.msra.mxu0 0.0
        %1259 = vmatprep.subr.mxu0 0.0
        %1260 = vmatpush1.msra.mxu0 0.0
        %1261 = vmatprep.subr.mxu0 0.0
        %1262 = vmatpush1.msra.mxu0 0.0
        %1263 = vmatprep.subr.mxu0 0.0
        %1264 = vmatpush1.msra.mxu0 0.0
        %1265 = vmatprep.subr.mxu0 0.0
        %1266 = vmatpush1.msra.mxu0 0.0
        %1267 = vmatprep.subr.mxu0 0.0
        %1268 = vmatpush1.msra.mxu0 0.0
        %1269 = vmatprep.subr.mxu0 0.0
        %1270 = vmatpush1.msra.mxu0 0.0
        %1271 = vmatprep.subr.mxu0 0.0
        %1272 = vmatpush1.msra.mxu0 0.0
        %1273 = vmatprep.subr.mxu0 0.0
        %1274 = vmatpush1.msra.mxu0 0.0
        %1275 = vmatprep.subr.mxu0 0.0
        %1276 = vmatpush1.msra.mxu0 0.0
        %1277 = vmatprep.subr.mxu0 0.0
        %1278 = vmatpush1.msra.mxu0 0.0
        %1279 = vmatprep.subr.mxu0 0.0
        %1280 = vmatpush1.msra.mxu0 0.0
        %1281 = vmatprep.subr.mxu0 0.0
        %1282 = vmatpush1.msra.mxu0 0.0
        %1283 = vmatprep.subr.mxu0 0.0
        %1284 = vmatpush1.msra.mxu0 0.0
        %1285 = vmatprep.subr.mxu0 0.0
        %1286 = vmatpush1.msra.mxu0 0.0
        %1287 = vmatprep.mubr.f32.mxu0 0.0
        %1288 = vmatmul.mubr.f32.gmra.mrb[0].mxu0 %v1012
        %v1289 = vpop.f32.mrb[0].mxu0
        %v1290 = vadd.f32 0.0, %v1289
        %v1291 = vpop.f32.mrb[0].mxu0
        %1292 = vdwg.mxu0
        %1293 = vmatprep.subr.mxu0 0.0
        %1294 = vmatpush1.xpose.msra.mxu0 %v550
        %1295 = vmatprep.subr.mxu0 0.0
        %1296 = vmatpush1.xpose.msra.mxu0 %v551
        %1297 = vmatprep.subr.mxu0 0.0
        %1298 = vmatpush1.xpose.msra.mxu0 %v552
        %1299 = vmatprep.subr.mxu0 0.0
        %1300 = vmatpush1.xpose.msra.mxu0 %v553
        %1301 = vmatprep.subr.mxu0 0.0
        %1302 = vmatpush1.xpose.msra.mxu0 %v554
        %1303 = vmatprep.subr.mxu0 0.0
        %1304 = vmatpush1.xpose.msra.mxu0 %v555
        %1305 = vmatprep.subr.mxu0 0.0
        %1306 = vmatpush1.xpose.msra.mxu0 %v556
        %1307 = vmatprep.subr.mxu0 0.0
        %1308 = vmatpush1.xpose.msra.mxu0 %v557
        %1309 = vmatprep.subr.mxu0 0.0
        %1310 = vmatpush1.xpose.msra.mxu0 %v558
        %1311 = vmatprep.subr.mxu0 0.0
        %1312 = vmatpush1.xpose.msra.mxu0 %v559
        %1313 = vmatprep.subr.mxu0 0.0
        %1314 = vmatpush1.xpose.msra.mxu0 %v560
        %1315 = vmatprep.subr.mxu0 0.0
        %1316 = vmatpush1.xpose.msra.mxu0 %v561
        %1317 = vmatprep.subr.mxu0 0.0
        %1318 = vmatpush1.xpose.msra.mxu0 %v562
        %1319 = vmatprep.subr.mxu0 0.0
        %1320 = vmatpush1.xpose.msra.mxu0 %v563
        %1321 = vmatprep.subr.mxu0 0.0
        %1322 = vmatpush1.xpose.msra.mxu0 %v564
        %1323 = vmatprep.subr.mxu0 0.0
        %1324 = vmatpush1.xpose.msra.mxu0 %v565
        %1325 = vmatprep.subr.mxu0 0.0
        %1326 = vmatpush1.xpose.msra.mxu0 0.0
        %1327 = vmatprep.subr.mxu0 0.0
        %1328 = vmatpush1.xpose.msra.mxu0 0.0
        %1329 = vmatprep.subr.mxu0 0.0
        %1330 = vmatpush1.xpose.msra.mxu0 0.0
        %1331 = vmatprep.subr.mxu0 0.0
        %1332 = vmatpush1.xpose.msra.mxu0 0.0
        %1333 = vmatprep.subr.mxu0 0.0
        %1334 = vmatpush1.xpose.msra.mxu0 0.0
        %1335 = vmatprep.subr.mxu0 0.0
        %1336 = vmatpush1.xpose.msra.mxu0 0.0
        %1337 = vmatprep.subr.mxu0 0.0
        %1338 = vmatpush1.xpose.msra.mxu0 0.0
        %1339 = vmatprep.subr.mxu0 0.0
        %1340 = vmatpush1.xpose.msra.mxu0 0.0
        %1341 = vmatprep.subr.mxu0 0.0
        %1342 = vmatpush1.xpose.msra.mxu0 0.0
        %1343 = vmatprep.subr.mxu0 0.0
        %1344 = vmatpush1.xpose.msra.mxu0 0.0
        %1345 = vmatprep.subr.mxu0 0.0
        %1346 = vmatpush1.xpose.msra.mxu0 0.0
        %1347 = vmatprep.subr.mxu0 0.0
        %1348 = vmatpush1.xpose.msra.mxu0 0.0
        %1349 = vmatprep.subr.mxu0 0.0
        %1350 = vmatpush1.xpose.msra.mxu0 0.0
        %1351 = vmatprep.subr.mxu0 0.0
        %1352 = vmatpush1.xpose.msra.mxu0 0.0
        %1353 = vmatprep.subr.mxu0 0.0
        %1354 = vmatpush1.xpose.msra.mxu0 0.0
        %1355 = vmatprep.subr.mxu0 0.0
        %1356 = vmatpush1.xpose.msra.mxu0 0.0
        %1357 = vmatprep.mubr.f32.mxu0 0.0
        %1358 = vmatmul.mubr.f32.gmra.mrb[0].mxu0 %v450
        %v1359 = vpop.f32.mrb[0].mxu0
        %v1360 = vadd.f32 0.0, %v1359
        %v1361 = vpop.f32.mrb[0].mxu0
        %1362 = vmatprep.mubr.f32.mxu0 0.0
        %1363 = vmatmul.mubr.f32.gmra.mrb[0].mxu0 %v451
        %v1364 = vpop.f32.mrb[0].mxu0
        %v1365 = vadd.f32 0.0, %v1364
        %v1366 = vpop.f32.mrb[0].mxu0
        %1367 = vmatprep.mubr.f32.mxu0 0.0
        %1368 = vmatmul.mubr.f32.gmra.mrb[0].mxu0 %v452
        %v1369 = vpop.f32.mrb[0].mxu0
        %v1370 = vadd.f32 0.0, %v1369
        %v1371 = vpop.f32.mrb[0].mxu0
        %1372 = vmatprep.mubr.f32.mxu0 0.0
        %1373 = vmatmul.mubr.f32.gmra.mrb[0].mxu0 %v453
        %v1374 = vpop.f32.mrb[0].mxu0
        %v1375 = vadd.f32 0.0, %v1374
        %v1376 = vpop.f32.mrb[0].mxu0
        %1377 = vdwg.mxu0
        %1378 = vmatprep.subr.mxu0 0.0
        %1379 = vmatpush1.xpose.msra.mxu0 %v534
        %1380 = vmatprep.subr.mxu0 0.0
        %1381 = vmatpush1.xpose.msra.mxu0 %v535
        %1382 = vmatprep.subr.mxu0 0.0
        %1383 = vmatpush1.xpose.msra.mxu0 %v536
        %1384 = vmatprep.subr.mxu0 0.0
        %1385 = vmatpush1.xpose.msra.mxu0 %v537
        %1386 = vmatprep.subr.mxu0 0.0
        %1387 = vmatpush1.xpose.msra.mxu0 %v538
        %1388 = vmatprep.subr.mxu0 0.0
        %1389 = vmatpush1.xpose.msra.mxu0 %v539
        %1390 = vmatprep.subr.mxu0 0.0
        %1391 = vmatpush1.xpose.msra.mxu0 %v540
        %1392 = vmatprep.subr.mxu0 0.0
        %1393 = vmatpush1.xpose.msra.mxu0 %v541
        %1394 = vmatprep.subr.mxu0 0.0
        %1395 = vmatpush1.xpose.msra.mxu0 %v542
        %1396 = vmatprep.subr.mxu0 0.0
        %1397 = vmatpush1.xpose.msra.mxu0 %v543
        %1398 = vmatprep.subr.mxu0 0.0
        %1399 = vmatpush1.xpose.msra.mxu0 %v544
        %1400 = vmatprep.subr.mxu0 0.0
        %1401 = vmatpush1.xpose.msra.mxu0 %v545
        %1402 = vmatprep.subr.mxu0 0.0
        %1403 = vmatpush1.xpose.msra.mxu0 %v546
        %1404 = vmatprep.subr.mxu0 0.0
        %1405 = vmatpush1.xpose.msra.mxu0 %v547
        %1406 = vmatprep.subr.mxu0 0.0
        %1407 = vmatpush1.xpose.msra.mxu0 %v548
        %1408 = vmatprep.subr.mxu0 0.0
        %1409 = vmatpush1.xpose.msra.mxu0 %v549
        %1410 = vmatprep.subr.mxu0 0.0
        %1411 = vmatpush1.xpose.msra.mxu0 0.0
        %1412 = vmatprep.subr.mxu0 0.0
        %1413 = vmatpush1.xpose.msra.mxu0 0.0
        %1414 = vmatprep.subr.mxu0 0.0
        %1415 = vmatpush1.xpose.msra.mxu0 0.0
        %1416 = vmatprep.subr.mxu0 0.0
        %1417 = vmatpush1.xpose.msra.mxu0 0.0
        %1418 = vmatprep.subr.mxu0 0.0
        %1419 = vmatpush1.xpose.msra.mxu0 0.0
        %1420 = vmatprep.subr.mxu0 0.0
        %1421 = vmatpush1.xpose.msra.mxu0 0.0
        %1422 = vmatprep.subr.mxu0 0.0
        %1423 = vmatpush1.xpose.msra.mxu0 0.0
        %1424 = vmatprep.subr.mxu0 0.0
        %1425 = vmatpush1.xpose.msra.mxu0 0.0
        %1426 = vmatprep.subr.mxu0 0.0
        %1427 = vmatpush1.xpose.msra.mxu0 0.0
        %1428 = vmatprep.subr.mxu0 0.0
        %1429 = vmatpush1.xpose.msra.mxu0 0.0
        %1430 = vmatprep.subr.mxu0 0.0
        %1431 = vmatpush1.xpose.msra.mxu0 0.0
        %1432 = vmatprep.subr.mxu0 0.0
        %1433 = vmatpush1.xpose.msra.mxu0 0.0
        %1434 = vmatprep.subr.mxu0 0.0
        %1435 = vmatpush1.xpose.msra.mxu0 0.0
        %1436 = vmatprep.subr.mxu0 0.0
        %1437 = vmatpush1.xpose.msra.mxu0 0.0
        %1438 = vmatprep.subr.mxu0 0.0
        %1439 = vmatpush1.xpose.msra.mxu0 0.0
        %1440 = vmatprep.subr.mxu0 0.0
        %1441 = vmatpush1.xpose.msra.mxu0 0.0
        %1442 = vmatprep.mubr.f32.mxu0 0.0
        %1443 = vmatmul.mubr.f32.gmra.mrb[0].mxu0 %v1080
        %v1444 = vpop.f32.mrb[0].mxu0
        %v1445 = vadd.f32 %v1360, %v1444
        %v1446 = vpop.f32.mrb[0].mxu0
        %1447 = vmatprep.mubr.f32.mxu0 0.0
        %1448 = vmatmul.mubr.f32.gmra.mrb[0].mxu0 %v1150
        %v1449 = vpop.f32.mrb[0].mxu0
        %v1450 = vadd.f32 %v1365, %v1449
        %v1451 = vpop.f32.mrb[0].mxu0
        %1452 = vmatprep.mubr.f32.mxu0 0.0
        %1453 = vmatmul.mubr.f32.gmra.mrb[0].mxu0 %v1220
        %v1454 = vpop.f32.mrb[0].mxu0
        %v1455 = vadd.f32 %v1370, %v1454
        %v1456 = vpop.f32.mrb[0].mxu0
        %1457 = vmatprep.mubr.f32.mxu0 0.0
        %1458 = vmatmul.mubr.f32.gmra.mrb[0].mxu0 %v1290
        %v1459 = vpop.f32.mrb[0].mxu0
        %v1460 = vadd.f32 %v1375, %v1459
        %v1461 = vpop.f32.mrb[0].mxu0
        %1462 = vdwg.mxu0
        %v1463 = vtanh.pop %v1445
        %v1464 = vtanh.pop %v1450
        %v1465 = vtanh.pop %v1455
        %v1466 = vtanh.pop %v1460
        %1467 = vst [vmem:[%s425] sm:$0xff] %v1463
        %1468 = vst [vmem:[%s425 + $0x8] sm:$0xff] %v1464
        %1469 = vst [vmem:[%s425 + $0x10] sm:$0xff] %v1465
        %1470 = vst [vmem:[%s425 + $0x18] sm:$0xff] %v1466
        %1471 = vst [vmem:[%s432] sm:$0xff] %v1009
        %1472 = vst [vmem:[%s432 + $0x8] sm:$0xff] %v1010
        %1473 = vst [vmem:[%s432 + $0x10] sm:$0xff] %v1011
        %1474 = vst [vmem:[%s432 + $0x18] sm:$0xff] %v1012
        %1475 = vst [vmem:[%s439] sm:$0xff] %v969
        %1476 = vst [vmem:[%s439 + $0x8] sm:$0xff] %v970
        %1477 = vst [vmem:[%s439 + $0x10] sm:$0xff] %v971
        %1478 = vst [vmem:[%s439 + $0x18] sm:$0xff] %v972
        %s1479 = sand.u32 %s182, 1
        %s1480 = scalar_lea.sflag [#allocation4], %s1479
        %s1481 = sand.u32 %s182, 1
        %s1482 = smul.addr %s1481, 32
        %s1483 = scalar_lea.vmem [#allocation11], %s1482
        %s1484 = sand.u32 %s33, 1
        %s1485 = scalar_lea.sflag [#allocation13], %s1484
        %s1486 = sand.u32 %s208, 1
        %s1487 = smul.addr %s1486, 32
        %s1488 = scalar_lea.vmem [#allocation12], %s1487
        %s1489 = sand.u32 %s33, 1
        %s1490 = scalar_lea.sflag [#allocation13], %s1489
        %s1491 = sand.u32 %s234, 1
        %s1492 = smul.addr %s1491, 32
        %s1493 = scalar_lea.vmem [#allocation14], %s1492
        // Predicated region
        $region65: #{tpu_custom_call.1} parent=43 // pred_check
          %p1494 = pneg %p192
        $region66: #{tpu_custom_call.1} parent=43 // pred_check_branch
          %1496 = sbr.rel (%p1494) target = $region68
        $region67: #{tpu_custom_call.1} parent=43 // pred_region
          %s1497 = smul.u32 4, %s33
          %s1499 = ssub.s32 512, 512
          %1500 = vsyncadd %s1480, %s1499
          %s1501 = smul.addr %s1497, 128
          %s1502 = scalar_lea.hbm %s6, %s1501
          %s1503 = sshll.u32 %s1483, 4
          %s1504 = int_to_ptr.vmem [resolvable:$true] %s1503
          %1509 = dma.vmem_to_hbm [thread:$0]  %s1504, 512, %s1502, %s1480, 128, 128, 8
        $region68: #{tpu_custom_call.1} parent=43 // pred_fallthru
          _
        // Predicated region
        $region69: #{tpu_custom_call.1} parent=43 // pred_check
          %p1510 = pneg %p218
        $region70: #{tpu_custom_call.1} parent=43 // pred_check_branch
          %1512 = sbr.rel (%p1510) target = $region72
        $region71: #{tpu_custom_call.1} parent=43 // pred_region
          %s1513 = smul.u32 4, %s33
          %s1515 = ssub.s32 512, 512
          %1516 = vsyncadd %s1485, %s1515
          %s1517 = smul.addr %s1513, 128
          %s1518 = scalar_lea.hbm %s7, %s1517
          %s1519 = sshll.u32 %s1488, 4
          %s1520 = int_to_ptr.vmem [resolvable:$true] %s1519
          %1525 = dma.vmem_to_hbm [thread:$0]  %s1520, 512, %s1518, %s1485, 128, 128, 8
        $region72: #{tpu_custom_call.1} parent=43 // pred_fallthru
          _
        // Predicated region
        $region73: #{tpu_custom_call.1} parent=43 // pred_check
          %p1526 = pneg %p244
        $region74: #{tpu_custom_call.1} parent=43 // pred_check_branch
          %1528 = sbr.rel (%p1526) target = $region76
        $region75: #{tpu_custom_call.1} parent=43 // pred_region
          %s1529 = smul.u32 4, %s33
          %s1531 = ssub.s32 512, 512
          %1532 = vsyncadd %s1490, %s1531
          %s1533 = smul.addr %s1529, 128
          %s1534 = scalar_lea.hbm %s8, %s1533
          %s1535 = sshll.u32 %s1493, 4
          %s1536 = int_to_ptr.vmem [resolvable:$true] %s1535
          %1541 = dma.vmem_to_hbm [thread:$0]  %s1536, 512, %s1534, %s1490, 128, 128, 8
        $region76: #{tpu_custom_call.1} parent=43 // pred_fallthru
          _
      $region44: #{tpu_custom_call.1} parent=5 // pred_fallthru
        _
      %p1542 = scmp.le.s32.totalorder 2, %s28
      // Predicated region
      $region77: #{tpu_custom_call.1} parent=5 // pred_check
        %p1543 = pneg %p1542
      $region78: #{tpu_custom_call.1} parent=5 // pred_check_branch
        %1545 = sbr.rel (%p1543) target = $region80
      $region79: #{tpu_custom_call.1} parent=5 // pred_region
        %s1546 = ssub.s32 %s28, 2
        // Predicated region
        $region81: #{tpu_custom_call.1} parent=79 // pred_check
          %p1547 = pneg %p198
        $region82: #{tpu_custom_call.1} parent=79 // pred_check_branch
          %1549 = sbr.rel (%p1547) target = $region84
        $region83: #{tpu_custom_call.1} parent=79 // pred_region
          %s1550 = sand.u32 %s183, 1
          %s1551 = scalar_lea.sflag [#allocation4], %s1550
          %s1552 = sand.u32 %s183, 1
          %s1553 = smul.addr %s1552, 32
          %s1554 = scalar_lea.vmem [#allocation11], %s1553
          %1555 = dma.done %s1551, 512
        $region84: #{tpu_custom_call.1} parent=79 // pred_fallthru
          _
        // Predicated region
        $region85: #{tpu_custom_call.1} parent=79 // pred_check
          %p1556 = pneg %p224
        $region86: #{tpu_custom_call.1} parent=79 // pred_check_branch
          %1558 = sbr.rel (%p1556) target = $region88
        $region87: #{tpu_custom_call.1} parent=79 // pred_region
          %s1559 = sand.u32 %s34, 1
          %s1560 = scalar_lea.sflag [#allocation13], %s1559
          %s1561 = sand.u32 %s209, 1
          %s1562 = smul.addr %s1561, 32
          %s1563 = scalar_lea.vmem [#allocation12], %s1562
          %1564 = dma.done %s1560, 512
        $region88: #{tpu_custom_call.1} parent=79 // pred_fallthru
          _
        // Predicated region
        $region89: #{tpu_custom_call.1} parent=79 // pred_check
          %p1565 = pneg %p250
        $region90: #{tpu_custom_call.1} parent=79 // pred_check_branch
          %1567 = sbr.rel (%p1565) target = $region92
        $region91: #{tpu_custom_call.1} parent=79 // pred_region
          %s1568 = sand.u32 %s34, 1
          %s1569 = scalar_lea.sflag [#allocation13], %s1568
          %s1570 = sand.u32 %s235, 1
          %s1571 = smul.addr %s1570, 32
          %s1572 = scalar_lea.vmem [#allocation14], %s1571
          %1573 = dma.done %s1569, 512
        $region92: #{tpu_custom_call.1} parent=79 // pred_fallthru
          _
      $region80: #{tpu_custom_call.1} parent=5 // pred_fallthru
        _
    $region6: #{tpu_custom_call.1} parent=1 // loop_footer
      %s32 = sadd.s32 1, %s28
    $region7: #{tpu_custom_call.1} parent=1 // loop_footer_branch
      %27 = sbr.rel target = $region3
    $region8: #{tpu_custom_call.1} parent=1 // loop_exit
      _
    %1574 = vsyncpa [#allocation3], 1
    %s1575 = scalar_lea.sflag [#allocation3], 1
    %1576 = vsyncpa %s1575, 1
    %1577 = vsyncpa [#allocation6], 1
    %s1578 = scalar_lea.sflag [#allocation6], 1
    %1579 = vsyncpa %s1578, 1
    %1580 = vsyncpa [#allocation9], 1
    %1581 = vsyncpa [#allocation4], 1
    %s1582 = scalar_lea.sflag [#allocation4], 1
    %1583 = vsyncpa %s1582, 1
    %1584 = vsyncpa [#allocation13], 1
    %s1585 = scalar_lea.sflag [#allocation13], 1
    %1586 = vsyncpa %s1585, 1

</llo_original>
